<compile_context>
chip_gen: v7x
topology: tpu7x:2x2x1
jax: 0.10.0
libtpu: 0.0.40
codegen_flags: <defaults>
</compile_context>

<pallas_src>
import functools

import jax
import jax.numpy as jnp
import numpy as np
from jax import lax
from jax.experimental import pallas as pl
from jax.experimental.pallas import tpu as pltpu

EPS = 1e-5          # PyTorch GroupNorm default eps
NUM_GROUPS = 32     # nn.GroupNorm(32, in_channels)


# ------------------------------ fused kernel ------------------------------

def _fused_gn_silu_conv3x3_kernel(x_ref, w_ref, gamma_ref, beta_ref, bias_ref,
                                  wcol_ref, o_ref, *, spatial_w, num_groups):
    """GroupNorm(32) + SiLU + 3x3 SAME conv for one batch element.

    x_ref     : (1, C, HW)           input activation
    w_ref     : (9*tap_pad, C) bf16  packed conv taps; rows [t*tap_pad, t*tap_pad+Cout)
                                     hold w_hwio[dh, dw].T for tap t = dh*3+dw, rest 0
    gamma_ref : (C, 1)  f32          GN scale        beta_ref : (C, 1) f32  GN shift
    bias_ref  : (Cout, 1) f32        conv bias
    wcol_ref  : (1, HW) int32        column-within-row index (p % W)
    o_ref     : (1, Cout, HW) f32    output (NCHW flattened -> lane dense)
    """
    C = x_ref.shape[1]
    HW = x_ref.shape[2]
    Cout = o_ref.shape[1]
    tap_pad = w_ref.shape[0] // 9
    G = num_groups
    gs = C // G
    Wsp = spatial_w

    # ---------------- GroupNorm statistics (single pass) ----------------
    xf = x_ref[0].astype(jnp.float32)                    # (C, HW)
    s1 = jnp.sum(xf, axis=1, keepdims=True)              # (C, 1) sum
    s2 = jnp.sum(xf * xf, axis=1, keepdims=True)         # (C, 1) sum of squares

    # Tiny one-hot group-membership matrices built in-register (iota only),
    # used to reduce per-channel sums to per-group values and broadcast back
    # (avoids cross-tile reshapes; only C*G elements).
    c_gc = lax.broadcasted_iota(jnp.int32, (G, C), 1)
    g_gc = lax.broadcasted_iota(jnp.int32, (G, C), 0)
    member_gc = ((c_gc >= g_gc * gs) & (c_gc < (g_gc + 1) * gs)).astype(jnp.float32)
    c_cg = lax.broadcasted_iota(jnp.int32, (C, G), 0)
    g_cg = lax.broadcasted_iota(jnp.int32, (C, G), 1)
    member_cg = ((c_cg >= g_cg * gs) & (c_cg < (g_cg + 1) * gs)).astype(jnp.float32)

    inv_n = 1.0 / float(gs * HW)
    sum_g = jnp.dot(member_gc, s1, preferred_element_type=jnp.float32)    # (G, 1)
    sumsq_g = jnp.dot(member_gc, s2, preferred_element_type=jnp.float32)  # (G, 1)
    mean_g = sum_g * inv_n
    var_g = sumsq_g * inv_n - mean_g * mean_g             # biased, like PyTorch
    rstd_g = lax.rsqrt(var_g + EPS)
    mean_c = jnp.dot(member_cg, mean_g, preferred_element_type=jnp.float32)  # (C,1)
    rstd_c = jnp.dot(member_cg, rstd_g, preferred_element_type=jnp.float32)  # (C,1)

    # ------------- normalize + affine + SiLU (f32, one pass) -------------
    scale = rstd_c * gamma_ref[...]                       # (C, 1)
    shift = beta_ref[...] - mean_c * scale                # (C, 1)
    y = xf * scale + shift                                # (C, HW)
    sig = pl.reciprocal(1.0 + jnp.exp(-y), approx=True)   # sigmoid, all on EUP
    act = (y * sig).astype(w_ref.dtype)                   # (C, HW) bf16 for MXU

    # ---------------- 3x3 SAME conv: one packed MXU matmul ----------------
    # mm[t*tap_pad + o, p] = sum_c w_hwio[dh, dw, c, o] * act[c, p]
    mm = jnp.dot(w_ref[...], act, preferred_element_type=jnp.float32)  # (9*tap_pad, HW)

    col = lax.broadcasted_iota(jnp.int32, (1, HW), 1)     # flattened index p = h*W+w
    wcol = wcol_ref[...]                                  # p % W

    acc = jnp.zeros((Cout, HW), jnp.float32)
    for dh in range(3):
        for dw in range(3):
            t = dh * 3 + dw
            m = mm[t * tap_pad:t * tap_pad + Cout, :]     # (Cout, HW), aligned slice
            # Output at p needs this tap evaluated at p + s (zero outside image).
            s = (dh - 1) * Wsp + (dw - 1)
            if s != 0:
                m = pltpu.roll(m, shift=(-s) % HW, axis=1)
            ok = None
            if dh == 0:
                ok = col >= Wsp                           # row h-1 exists
            elif dh == 2:
                ok = col < HW - Wsp                       # row h+1 exists
            if dw == 0:
                cm = wcol >= 1                            # col w-1 exists
                ok = cm if ok is None else (ok & cm)
            elif dw == 2:
                cm = wcol <= Wsp - 2                      # col w+1 exists
                ok = cm if ok is None else (ok & cm)
            if ok is not None:
                m = m * ok.astype(jnp.float32)            # (1,HW) sublane-broadcast mask
            acc = acc + m

    acc = acc + bias_ref[...]                             # (Cout,1) lane-broadcast
    o_ref[0] = acc.astype(o_ref.dtype)                    # lane-dense store


# ------------------------------ wrapper (glue) ------------------------------

def unet_output_layer(x_nchw, gamma, beta, w_hwio, bias, *, num_groups=NUM_GROUPS):
    N, C, H, W = x_nchw.shape
    kh, kw, wc_in, Cout = w_hwio.shape
    assert (kh, kw) == (3, 3) and wc_in == C and C % num_groups == 0
    HW = H * W
    tap_pad = -(-Cout // 8) * 8   # round Cout up to a sublane multiple per tap

    # NCHW -> (N, C, H*W): trailing-dim merge, no data movement.
    x_flat = x_nchw.reshape(N, C, HW)

    # Pack conv taps: (3,3,Cin,Cout) -> (9, Cout, Cin), pad Cout to tap_pad,
    # flatten to (9*tap_pad, Cin).  Lane dim = Cin (dense); bf16 for the MXU.
    w_taps = jnp.transpose(w_hwio, (0, 1, 3, 2)).reshape(9, Cout, C)
    w_packed = jnp.pad(w_taps, ((0, 0), (0, tap_pad - Cout), (0, 0)))
    w_packed = w_packed.reshape(9 * tap_pad, C).astype(jnp.bfloat16)

    gamma2 = gamma.reshape(C, 1).astype(jnp.float32)
    beta2 = beta.reshape(C, 1).astype(jnp.float32)
    bias2 = bias.reshape(Cout, 1).astype(jnp.float32)
    # Column-within-row index, used for the SAME-padding masks (tiny constant).
    wcol = jnp.asarray(np.tile(np.arange(W, dtype=np.int32), H)[None, :])

    kernel = functools.partial(_fused_gn_silu_conv3x3_kernel,
                               spatial_w=W, num_groups=num_groups)

    out = pl.pallas_call(
        kernel,
        out_shape=jax.ShapeDtypeStruct((N, Cout, HW), jnp.float32),
        grid_spec=pltpu.PrefetchScalarGridSpec(
            num_scalar_prefetch=0,
            grid=(N,),
            in_specs=[
                pl.BlockSpec((1, C, HW), lambda n: (n, 0, 0)),         # activation slab
                pl.BlockSpec((9 * tap_pad, C), lambda n: (0, 0)),      # packed taps
                pl.BlockSpec((C, 1), lambda n: (0, 0)),                # gamma
                pl.BlockSpec((C, 1), lambda n: (0, 0)),                # beta
                pl.BlockSpec((Cout, 1), lambda n: (0, 0)),             # conv bias
                pl.BlockSpec((1, HW), lambda n: (0, 0)),               # column index
            ],
            out_specs=pl.BlockSpec((1, Cout, HW), lambda n: (n, 0, 0)),
        ),
        compiler_params=pltpu.CompilerParams(
            dimension_semantics=("parallel",),
            vmem_limit_bytes=48 * 1024 * 1024,
        ),
    )(x_flat, w_packed, gamma2, beta2, bias2, wcol)

    # TODO(synk): for very large C*H*W (e.g. 320x64x64 on v7x's 64 MiB VMEM),
    # tile the spatial axis inside the kernel with pltpu.emit_pipeline
    # (stats pass + normalize/conv pass) instead of holding the whole slab.
    return out.reshape(N, Cout, H, W)   # trailing-dim split, free (already NCHW)


# ----------------------------- pure-JAX reference ---------------------------

def reference(x, gamma, beta, w_hwio, bias, num_groups=NUM_GROUPS):
    N, C, H, W = x.shape
    xg = x.reshape(N, num_groups, -1)
    mean = xg.mean(-1, keepdims=True)
    var = ((xg - mean) ** 2).mean(-1, keepdims=True)
    xn = ((xg - mean) / jnp.sqrt(var + EPS)).reshape(N, C, H, W)
    y = xn * gamma.reshape(1, C, 1, 1) + beta.reshape(1, C, 1, 1)
    y = y * jax.nn.sigmoid(y)
    y_nhwc = y.transpose(0, 2, 3, 1)
    out = lax.conv_general_dilated(
        y_nhwc, w_hwio, window_strides=(1, 1), padding="SAME",
        dimension_numbers=("NHWC", "HWIO", "NHWC"))
    out = out + bias.reshape(1, 1, 1, -1)
    return out.transpose(0, 3, 1, 2)


# ----------------------------------- main -----------------------------------

if __name__ == "__main__":
    key = jax.random.PRNGKey(0)
    k1, k2, k3, k4, k5 = jax.random.split(key, 5)

    # Small shapes consistent with the module (GroupNorm needs C % 32 == 0).
    N, Cin, Cout, H, W = 2, 64, 4, 16, 16

    x = jax.random.normal(k1, (N, Cin, H, W), jnp.float32)
    gamma = 1.0 + 0.1 * jax.random.normal(k2, (Cin,), jnp.float32)       # GN weight
    beta = 0.1 * jax.random.normal(k3, (Cin,), jnp.float32)              # GN bias
    w_hwio = 0.05 * jax.random.normal(k4, (3, 3, Cin, Cout), jnp.float32)  # conv weight
    bias = 0.05 * jax.random.normal(k5, (Cout,), jnp.float32)            # conv bias

    out = unet_output_layer(x, gamma, beta, w_hwio, bias)
    out = jax.block_until_ready(out)

    assert out.shape == (N, Cout, H, W)
    ref = reference(x, gamma, beta, w_hwio, bias)
    # bf16 MXU operands (f32 accumulation) + EUP approximate reciprocal in the
    # sigmoid introduce ~1e-2-level absolute deltas at O(1) output magnitudes.
    max_err = float(jnp.max(jnp.abs(out - ref)))
    assert jnp.allclose(out, ref, atol=2e-2, rtol=2e-2), f"max_err={max_err}"
    print("KERNEL_OK")
</pallas_src>

<mosaic_0001>
module attributes {stable_mosaic.version = 11 : i64} {
  func.func @_fused_gn_silu_conv3x3_kernel(%arg0: i32, %arg1: memref<1x64x256xf32, #tpu.memory_space<vmem>>, %arg2: memref<72x64xbf16, #tpu.memory_space<vmem>>, %arg3: memref<64x1xf32, #tpu.memory_space<vmem>>, %arg4: memref<64x1xf32, #tpu.memory_space<vmem>>, %arg5: memref<4x1xf32, #tpu.memory_space<vmem>>, %arg6: memref<1x256xi32, #tpu.memory_space<vmem>>, %arg7: memref<1x4x256xf32, #tpu.memory_space<vmem>>) attributes {dimension_semantics = [#tpu.dimension_semantics<parallel>], iteration_bounds = array<i64: 2>, scalar_prefetch = 0 : i64, scratch_operands = 0 : i64, tpu.core_type = #tpu.core_type<tc>, window_params = [{transform_indices = @transform_0, window_bounds = array<i64: 1, 64, 256>}, {pipeline_mode = #tpu.pipeline_mode<synchronous>, transform_indices = @transform_1, window_bounds = array<i64: 72, 64>}, {pipeline_mode = #tpu.pipeline_mode<synchronous>, transform_indices = @transform_2, window_bounds = array<i64: 64, 1>}, {pipeline_mode = #tpu.pipeline_mode<synchronous>, transform_indices = @transform_3, window_bounds = array<i64: 64, 1>}, {pipeline_mode = #tpu.pipeline_mode<synchronous>, transform_indices = @transform_4, window_bounds = array<i64: 4, 1>}, {pipeline_mode = #tpu.pipeline_mode<synchronous>, transform_indices = @transform_5, window_bounds = array<i64: 1, 256>}, {transform_indices = @transform_6, window_bounds = array<i64: 1, 4, 256>}]} {
    %c0 = arith.constant 0 : index
    %c0_0 = arith.constant 0 : index
    %c0_1 = arith.constant 0 : index
    %0 = vector.load %arg1[%c0, %c0_0, %c0_1] : memref<1x64x256xf32, #tpu.memory_space<vmem>>, vector<1x64x256xf32>
    %1 = vector.shape_cast %0 : vector<1x64x256xf32> to vector<64x256xf32>
    %cst = arith.constant dense<0.000000e+00> : vector<64xf32>
    %2 = vector.multi_reduction <add>, %1, %cst [1] : vector<64x256xf32> to vector<64xf32>
    %3 = vector.shape_cast %2 : vector<64xf32> to vector<64x1xf32>
    %4 = arith.mulf %1, %1 : vector<64x256xf32>
    %cst_2 = arith.constant dense<0.000000e+00> : vector<64xf32>
    %5 = vector.multi_reduction <add>, %4, %cst_2 [1] : vector<64x256xf32> to vector<64xf32>
    %6 = vector.shape_cast %5 : vector<64xf32> to vector<64x1xf32>
    %7 = tpu.iota {dimensions = array<i32: 1>} : vector<32x64xi32>
    %8 = tpu.iota {dimensions = array<i32: 0>} : vector<32x64xi32>
    %c2_i32 = arith.constant 2 : i32
    %9 = vector.broadcast %c2_i32 : i32 to vector<32x64xi32>
    %10 = arith.muli %8, %9 : vector<32x64xi32>
    %11 = arith.cmpi sge, %7, %10 : vector<32x64xi32>
    %c1_i32 = arith.constant 1 : i32
    %12 = vector.broadcast %c1_i32 : i32 to vector<32x64xi32>
    %13 = arith.addi %8, %12 : vector<32x64xi32>
    %c2_i32_3 = arith.constant 2 : i32
    %14 = vector.broadcast %c2_i32_3 : i32 to vector<32x64xi32>
    %15 = arith.muli %13, %14 : vector<32x64xi32>
    %16 = arith.cmpi slt, %7, %15 : vector<32x64xi32>
    %17 = arith.andi %11, %16 : vector<32x64xi1>
    %18 = arith.extui %17 : vector<32x64xi1> to vector<32x64xi32>
    %19 = arith.sitofp %18 : vector<32x64xi32> to vector<32x64xf32>
    %20 = tpu.iota {dimensions = array<i32: 0>} : vector<64x32xi32>
    %21 = tpu.iota {dimensions = array<i32: 1>} : vector<64x32xi32>
    %c2_i32_4 = arith.constant 2 : i32
    %22 = vector.broadcast %c2_i32_4 : i32 to vector<64x32xi32>
    %23 = arith.muli %21, %22 : vector<64x32xi32>
    %24 = arith.cmpi sge, %20, %23 : vector<64x32xi32>
    %c1_i32_5 = arith.constant 1 : i32
    %25 = vector.broadcast %c1_i32_5 : i32 to vector<64x32xi32>
    %26 = arith.addi %21, %25 : vector<64x32xi32>
    %c2_i32_6 = arith.constant 2 : i32
    %27 = vector.broadcast %c2_i32_6 : i32 to vector<64x32xi32>
    %28 = arith.muli %26, %27 : vector<64x32xi32>
    %29 = arith.cmpi slt, %20, %28 : vector<64x32xi32>
    %30 = arith.andi %24, %29 : vector<64x32xi1>
    %31 = arith.extui %30 : vector<64x32xi1> to vector<64x32xi32>
    %32 = arith.sitofp %31 : vector<64x32xi32> to vector<64x32xf32>
    %cst_7 = arith.constant dense<0.000000e+00> : vector<32x1xf32>
    %33 = tpu.matmul %19, %3, %cst_7 {dimension_numbers = #tpu.dot_dimension_numbers<[1], [0], [0], [1], [0, 0, 1, 1], [], []>} : vector<32x64xf32>, vector<64x1xf32>, vector<32x1xf32> -> vector<32x1xf32>
    %cst_8 = arith.constant dense<0.000000e+00> : vector<32x1xf32>
    %34 = tpu.matmul %19, %6, %cst_8 {dimension_numbers = #tpu.dot_dimension_numbers<[1], [0], [0], [1], [0, 0, 1, 1], [], []>} : vector<32x64xf32>, vector<64x1xf32>, vector<32x1xf32> -> vector<32x1xf32>
    %cst_9 = arith.constant 0.001953125 : f32
    %35 = vector.broadcast %cst_9 : f32 to vector<32x1xf32>
    %36 = arith.mulf %33, %35 : vector<32x1xf32>
    %cst_10 = arith.constant 0.001953125 : f32
    %37 = vector.broadcast %cst_10 : f32 to vector<32x1xf32>
    %38 = arith.mulf %34, %37 : vector<32x1xf32>
    %39 = arith.mulf %36, %36 : vector<32x1xf32>
    %40 = arith.subf %38, %39 : vector<32x1xf32>
    %cst_11 = arith.constant 9.99999974E-6 : f32
    %41 = vector.broadcast %cst_11 : f32 to vector<32x1xf32>
    %42 = arith.addf %40, %41 : vector<32x1xf32>
    %43 = math.rsqrt %42 : vector<32x1xf32>
    %cst_12 = arith.constant dense<0.000000e+00> : vector<64x1xf32>
    %44 = tpu.matmul %32, %36, %cst_12 {dimension_numbers = #tpu.dot_dimension_numbers<[1], [0], [0], [1], [0, 0, 1, 1], [], []>} : vector<64x32xf32>, vector<32x1xf32>, vector<64x1xf32> -> vector<64x1xf32>
    %cst_13 = arith.constant dense<0.000000e+00> : vector<64x1xf32>
    %45 = tpu.matmul %32, %43, %cst_13 {dimension_numbers = #tpu.dot_dimension_numbers<[1], [0], [0], [1], [0, 0, 1, 1], [], []>} : vector<64x32xf32>, vector<32x1xf32>, vector<64x1xf32> -> vector<64x1xf32>
    %c0_14 = arith.constant 0 : index
    %c0_15 = arith.constant 0 : index
    %46 = vector.load %arg3[%c0_14, %c0_15] : memref<64x1xf32, #tpu.memory_space<vmem>>, vector<64x1xf32>
    %47 = arith.mulf %45, %46 : vector<64x1xf32>
    %c0_16 = arith.constant 0 : index
    %c0_17 = arith.constant 0 : index
    %48 = vector.load %arg4[%c0_16, %c0_17] : memref<64x1xf32, #tpu.memory_space<vmem>>, vector<64x1xf32>
    %49 = arith.mulf %44, %47 : vector<64x1xf32>
    %50 = arith.subf %48, %49 : vector<64x1xf32>
    %51 = vector.broadcast %47 : vector<64x1xf32> to vector<64x256xf32>
    %52 = arith.mulf %1, %51 : vector<64x256xf32>
    %53 = vector.broadcast %50 : vector<64x1xf32> to vector<64x256xf32>
    %54 = arith.addf %52, %53 : vector<64x256xf32>
    %cst_18 = arith.constant 0.000000e+00 : f32
    %55 = vector.broadcast %cst_18 : f32 to vector<64x256xf32>
    %56 = arith.subf %55, %54 : vector<64x256xf32>
    %57 = math.exp %56 : vector<64x256xf32>
    %cst_19 = arith.constant 1.000000e+00 : f32
    %58 = vector.broadcast %cst_19 : f32 to vector<64x256xf32>
    %59 = arith.addf %58, %57 : vector<64x256xf32>
    %60 = tpu.reciprocal %59 {approx = true} : vector<64x256xf32> -> vector<64x256xf32>
    %61 = arith.mulf %54, %60 : vector<64x256xf32>
    %62 = arith.truncf %61 : vector<64x256xf32> to vector<64x256xbf16>
    %c0_20 = arith.constant 0 : index
    %c0_21 = arith.constant 0 : index
    %63 = vector.load %arg2[%c0_20, %c0_21] : memref<72x64xbf16, #tpu.memory_space<vmem>>, vector<72x64xbf16>
    %cst_22 = arith.constant dense<0.000000e+00> : vector<72x256xf32>
    %64 = tpu.matmul %63, %62, %cst_22 {dimension_numbers = #tpu.dot_dimension_numbers<[1], [0], [0], [1], [0, 0, 1, 1], [], []>} : vector<72x64xbf16>, vector<64x256xbf16>, vector<72x256xf32> -> vector<72x256xf32>
    %65 = tpu.iota {dimensions = array<i32: 1>} : vector<1x256xi32>
    %c0_23 = arith.constant 0 : index
    %c0_24 = arith.constant 0 : index
    %66 = vector.load %arg6[%c0_23, %c0_24] : memref<1x256xi32, #tpu.memory_space<vmem>>, vector<1x256xi32>
    %cst_25 = arith.constant 0.000000e+00 : f32
    %67 = vector.broadcast %cst_25 : f32 to vector<4x256xf32>
    %68 = vector.extract_strided_slice %64 {offsets = [0, 0], sizes = [4, 256], strides = [1, 1]} : vector<72x256xf32> to vector<4x256xf32>
    %c17_i32 = arith.constant 17 : i32
    %69 = tpu.dynamic_rotate %68 by %c17_i32 dim 1 : vector<4x256xf32>, i32 -> vector<4x256xf32>
    %c16_i32 = arith.constant 16 : i32
    %70 = vector.broadcast %c16_i32 : i32 to vector<1x256xi32>
    %71 = arith.cmpi sge, %65, %70 : vector<1x256xi32>
    %c1_i32_26 = arith.constant 1 : i32
    %72 = vector.broadcast %c1_i32_26 : i32 to vector<1x256xi32>
    %73 = arith.cmpi sge, %66, %72 : vector<1x256xi32>
    %74 = arith.andi %71, %73 : vector<1x256xi1>
    %75 = arith.extui %74 : vector<1x256xi1> to vector<1x256xi32>
    %76 = arith.sitofp %75 : vector<1x256xi32> to vector<1x256xf32>
    %77 = vector.broadcast %76 : vector<1x256xf32> to vector<4x256xf32>
    %78 = arith.mulf %69, %77 : vector<4x256xf32>
    %79 = arith.addf %67, %78 : vector<4x256xf32>
    %80 = vector.extract_strided_slice %64 {offsets = [8, 0], sizes = [4, 256], strides = [1, 1]} : vector<72x256xf32> to vector<4x256xf32>
    %c16_i32_27 = arith.constant 16 : i32
    %81 = tpu.dynamic_rotate %80 by %c16_i32_27 dim 1 : vector<4x256xf32>, i32 -> vector<4x256xf32>
    %c16_i32_28 = arith.constant 16 : i32
    %82 = vector.broadcast %c16_i32_28 : i32 to vector<1x256xi32>
    %83 = arith.cmpi sge, %65, %82 : vector<1x256xi32>
    %84 = arith.extui %83 : vector<1x256xi1> to vector<1x256xi32>
    %85 = arith.sitofp %84 : vector<1x256xi32> to vector<1x256xf32>
    %86 = vector.broadcast %85 : vector<1x256xf32> to vector<4x256xf32>
    %87 = arith.mulf %81, %86 : vector<4x256xf32>
    %88 = arith.addf %79, %87 : vector<4x256xf32>
    %89 = vector.extract_strided_slice %64 {offsets = [16, 0], sizes = [4, 256], strides = [1, 1]} : vector<72x256xf32> to vector<4x256xf32>
    %c15_i32 = arith.constant 15 : i32
    %90 = tpu.dynamic_rotate %89 by %c15_i32 dim 1 : vector<4x256xf32>, i32 -> vector<4x256xf32>
    %c16_i32_29 = arith.constant 16 : i32
    %91 = vector.broadcast %c16_i32_29 : i32 to vector<1x256xi32>
    %92 = arith.cmpi sge, %65, %91 : vector<1x256xi32>
    %c14_i32 = arith.constant 14 : i32
    %93 = vector.broadcast %c14_i32 : i32 to vector<1x256xi32>
    %94 = arith.cmpi sle, %66, %93 : vector<1x256xi32>
    %95 = arith.andi %92, %94 : vector<1x256xi1>
    %96 = arith.extui %95 : vector<1x256xi1> to vector<1x256xi32>
    %97 = arith.sitofp %96 : vector<1x256xi32> to vector<1x256xf32>
    %98 = vector.broadcast %97 : vector<1x256xf32> to vector<4x256xf32>
    %99 = arith.mulf %90, %98 : vector<4x256xf32>
    %100 = arith.addf %88, %99 : vector<4x256xf32>
    %101 = vector.extract_strided_slice %64 {offsets = [24, 0], sizes = [4, 256], strides = [1, 1]} : vector<72x256xf32> to vector<4x256xf32>
    %c1_i32_30 = arith.constant 1 : i32
    %102 = tpu.dynamic_rotate %101 by %c1_i32_30 dim 1 : vector<4x256xf32>, i32 -> vector<4x256xf32>
    %c1_i32_31 = arith.constant 1 : i32
    %103 = vector.broadcast %c1_i32_31 : i32 to vector<1x256xi32>
    %104 = arith.cmpi sge, %66, %103 : vector<1x256xi32>
    %105 = arith.extui %104 : vector<1x256xi1> to vector<1x256xi32>
    %106 = arith.sitofp %105 : vector<1x256xi32> to vector<1x256xf32>
    %107 = vector.broadcast %106 : vector<1x256xf32> to vector<4x256xf32>
    %108 = arith.mulf %102, %107 : vector<4x256xf32>
    %109 = arith.addf %100, %108 : vector<4x256xf32>
    %110 = vector.extract_strided_slice %64 {offsets = [32, 0], sizes = [4, 256], strides = [1, 1]} : vector<72x256xf32> to vector<4x256xf32>
    %111 = arith.addf %109, %110 : vector<4x256xf32>
    %112 = vector.extract_strided_slice %64 {offsets = [40, 0], sizes = [4, 256], strides = [1, 1]} : vector<72x256xf32> to vector<4x256xf32>
    %c255_i32 = arith.constant 255 : i32
    %113 = tpu.dynamic_rotate %112 by %c255_i32 dim 1 : vector<4x256xf32>, i32 -> vector<4x256xf32>
    %c14_i32_32 = arith.constant 14 : i32
    %114 = vector.broadcast %c14_i32_32 : i32 to vector<1x256xi32>
    %115 = arith.cmpi sle, %66, %114 : vector<1x256xi32>
    %116 = arith.extui %115 : vector<1x256xi1> to vector<1x256xi32>
    %117 = arith.sitofp %116 : vector<1x256xi32> to vector<1x256xf32>
    %118 = vector.broadcast %117 : vector<1x256xf32> to vector<4x256xf32>
    %119 = arith.mulf %113, %118 : vector<4x256xf32>
    %120 = arith.addf %111, %119 : vector<4x256xf32>
    %121 = vector.extract_strided_slice %64 {offsets = [48, 0], sizes = [4, 256], strides = [1, 1]} : vector<72x256xf32> to vector<4x256xf32>
    %c241_i32 = arith.constant 241 : i32
    %122 = tpu.dynamic_rotate %121 by %c241_i32 dim 1 : vector<4x256xf32>, i32 -> vector<4x256xf32>
    %c240_i32 = arith.constant 240 : i32
    %123 = vector.broadcast %c240_i32 : i32 to vector<1x256xi32>
    %124 = arith.cmpi slt, %65, %123 : vector<1x256xi32>
    %c1_i32_33 = arith.constant 1 : i32
    %125 = vector.broadcast %c1_i32_33 : i32 to vector<1x256xi32>
    %126 = arith.cmpi sge, %66, %125 : vector<1x256xi32>
    %127 = arith.andi %124, %126 : vector<1x256xi1>
    %128 = arith.extui %127 : vector<1x256xi1> to vector<1x256xi32>
    %129 = arith.sitofp %128 : vector<1x256xi32> to vector<1x256xf32>
    %130 = vector.broadcast %129 : vector<1x256xf32> to vector<4x256xf32>
    %131 = arith.mulf %122, %130 : vector<4x256xf32>
    %132 = arith.addf %120, %131 : vector<4x256xf32>
    %133 = vector.extract_strided_slice %64 {offsets = [56, 0], sizes = [4, 256], strides = [1, 1]} : vector<72x256xf32> to vector<4x256xf32>
    %c240_i32_34 = arith.constant 240 : i32
    %134 = tpu.dynamic_rotate %133 by %c240_i32_34 dim 1 : vector<4x256xf32>, i32 -> vector<4x256xf32>
    %c240_i32_35 = arith.constant 240 : i32
    %135 = vector.broadcast %c240_i32_35 : i32 to vector<1x256xi32>
    %136 = arith.cmpi slt, %65, %135 : vector<1x256xi32>
    %137 = arith.extui %136 : vector<1x256xi1> to vector<1x256xi32>
    %138 = arith.sitofp %137 : vector<1x256xi32> to vector<1x256xf32>
    %139 = vector.broadcast %138 : vector<1x256xf32> to vector<4x256xf32>
    %140 = arith.mulf %134, %139 : vector<4x256xf32>
    %141 = arith.addf %132, %140 : vector<4x256xf32>
    %142 = vector.extract_strided_slice %64 {offsets = [64, 0], sizes = [4, 256], strides = [1, 1]} : vector<72x256xf32> to vector<4x256xf32>
    %c239_i32 = arith.constant 239 : i32
    %143 = tpu.dynamic_rotate %142 by %c239_i32 dim 1 : vector<4x256xf32>, i32 -> vector<4x256xf32>
    %c240_i32_36 = arith.constant 240 : i32
    %144 = vector.broadcast %c240_i32_36 : i32 to vector<1x256xi32>
    %145 = arith.cmpi slt, %65, %144 : vector<1x256xi32>
    %c14_i32_37 = arith.constant 14 : i32
    %146 = vector.broadcast %c14_i32_37 : i32 to vector<1x256xi32>
    %147 = arith.cmpi sle, %66, %146 : vector<1x256xi32>
    %148 = arith.andi %145, %147 : vector<1x256xi1>
    %149 = arith.extui %148 : vector<1x256xi1> to vector<1x256xi32>
    %150 = arith.sitofp %149 : vector<1x256xi32> to vector<1x256xf32>
    %151 = vector.broadcast %150 : vector<1x256xf32> to vector<4x256xf32>
    %152 = arith.mulf %143, %151 : vector<4x256xf32>
    %153 = arith.addf %141, %152 : vector<4x256xf32>
    %c0_38 = arith.constant 0 : index
    %c0_39 = arith.constant 0 : index
    %154 = vector.load %arg5[%c0_38, %c0_39] : memref<4x1xf32, #tpu.memory_space<vmem>>, vector<4x1xf32>
    %155 = vector.broadcast %154 : vector<4x1xf32> to vector<4x256xf32>
    %156 = arith.addf %153, %155 : vector<4x256xf32>
    %c0_40 = arith.constant 0 : index
    %c0_41 = arith.constant 0 : index
    %c0_42 = arith.constant 0 : index
    %157 = vector.load %arg7[%c0_40, %c0_41, %c0_42] : memref<1x4x256xf32, #tpu.memory_space<vmem>>, vector<1x4x256xf32>
    %158 = vector.shape_cast %157 : vector<1x4x256xf32> to vector<4x256xf32>
    %159 = vector.shape_cast %156 : vector<4x256xf32> to vector<1x4x256xf32>
    tpu.vector_store %arg7[%c0_40, %c0_41, %c0_42], %159 {strides = array<i32>} : memref<1x4x256xf32, #tpu.memory_space<vmem>>, vector<1x4x256xf32>,
    return
  }
  func.func @transform_0(%arg0: i32) -> (i32, i32, i32) {
    %c0_i32 = arith.constant 0 : i32
    %c0_i32_0 = arith.constant 0 : i32
    %c0_i32_1 = arith.constant 0 : i32
    return %arg0, %c0_i32, %c0_i32_0 : i32, i32, i32
  }
  func.func @transform_1(%arg0: i32) -> (i32, i32) {
    %c0_i32 = arith.constant 0 : i32
    %c0_i32_0 = arith.constant 0 : i32
    %c0_i32_1 = arith.constant 0 : i32
    return %c0_i32, %c0_i32_0 : i32, i32
  }
  func.func @transform_2(%arg0: i32) -> (i32, i32) {
    %c0_i32 = arith.constant 0 : i32
    %c0_i32_0 = arith.constant 0 : i32
    %c0_i32_1 = arith.constant 0 : i32
    return %c0_i32, %c0_i32_0 : i32, i32
  }
  func.func @transform_3(%arg0: i32) -> (i32, i32) {
    %c0_i32 = arith.constant 0 : i32
    %c0_i32_0 = arith.constant 0 : i32
    %c0_i32_1 = arith.constant 0 : i32
    return %c0_i32, %c0_i32_0 : i32, i32
  }
  func.func @transform_4(%arg0: i32) -> (i32, i32) {
    %c0_i32 = arith.constant 0 : i32
    %c0_i32_0 = arith.constant 0 : i32
    %c0_i32_1 = arith.constant 0 : i32
    return %c0_i32, %c0_i32_0 : i32, i32
  }
  func.func @transform_5(%arg0: i32) -> (i32, i32) {
    %c0_i32 = arith.constant 0 : i32
    %c0_i32_0 = arith.constant 0 : i32
    %c0_i32_1 = arith.constant 0 : i32
    return %c0_i32, %c0_i32_0 : i32, i32
  }
  func.func @transform_6(%arg0: i32) -> (i32, i32, i32) {
    %c0_i32 = arith.constant 0 : i32
    %c0_i32_0 = arith.constant 0 : i32
    %c0_i32_1 = arith.constant 0 : i32
    return %arg0, %c0_i32, %c0_i32_0 : i32, i32, i32
  }
}

</mosaic_0001>

<llo_original>
// kernel: tpu_custom_call.1
$region0: #{tpu_custom_call.1}
  #allocation0 [shape = 'u32[]', space=smem, size = 0x4, offset = 0x4, fixed_abs, tag = 'smem constant byte address 0x4 - core index']
  #allocation1 [shape = 'u32[144,128]{1,0:T(1,128)}', space=vmem, size = 0x12000, scoped, tag = 'internal scratch']
  %s0 = inlined_call_operand.hbm [shape: f32[2,64,256], index: 0, kind: input, shape index: {}]
  %s1 = inlined_call_operand.vmem [shape: bf16[72,64], index: 1, kind: input, shape index: {}]
  %s2 = inlined_call_operand.vmem [shape: f32[64,1], index: 2, kind: input, shape index: {}]
  %s3 = inlined_call_operand.vmem [shape: f32[64,1], index: 3, kind: input, shape index: {}]
  %s4 = inlined_call_operand.vmem [shape: f32[4,1], index: 4, kind: input, shape index: {}]
  %s5 = inlined_call_operand.vmem [shape: s32[1,256], index: 5, kind: input, shape index: {}]
  %s6 = inlined_call_operand.hbm [shape: f32[2,4,256], index: 6, kind: output, shape index: {}]
  %s7 = sld [smem:[#allocation0]]
  $region61: #{tpu_custom_call.1} parent=0
    _
  %s9 = ssub.s32 1, %s7
  %s10 = scalar_select 0, %s9, %s7
  $region1: #{tpu_custom_call.1} parent=0
    #allocation2 [shape = 'u8[131072]{0}', space=vmem, size = 0x20000, scoped, tag = 'input window, operand 0']
    #allocation3 [shape = 's32[2]{0}', space=sflag, size = 0x8, scoped, tag = 'scoped memory for tpu_custom_call.1']
    #allocation4 [shape = 's32[2]{0}', space=sflag, size = 0x8, scoped, tag = 'scoped memory for tpu_custom_call.1']
    #allocation5 [shape = 'u8[8192]{0}', space=vmem, size = 0x2000, scoped, tag = 'output window, operand 0']
    %11 = vsyncpa [#allocation3], 0
    %s12 = scalar_lea.sflag [#allocation3], 1
    %13 = vsyncpa %s12, 0
    %14 = vsyncpa [#allocation4], 0
    %s15 = scalar_lea.sflag [#allocation4], 1
    %16 = vsyncpa %s15, 0
    loop: start=0, step=1, limit=4
    $region2: #{tpu_custom_call.1} parent=1 // loop_pre_header
      _
    $region3: #{tpu_custom_call.1} parent=1 // loop_header
      %s18 = sphi 0, %s22
      %p19 = scmp.ge.s32.totalorder %s18, 4
      %s28 = sphi 0, %s30
      %s31 = sphi 0, %s28
      %s32 = sphi 0, %s31
      %s48 = sphi 0, %s32
      %s52 = sphi 0, %s52
      %s54 = sphi 0, %s52
      %s55 = sphi 0, %s54
      %s69 = sphi 0, %s55
      %s73 = sphi 0, %s73
      %s75 = sphi 0, %s73
      %s76 = sphi 0, %s75
      %s90 = sphi 0, %s76
      %s94 = sphi 0, %s94
      %s96 = sphi 0, %s94
      %s97 = sphi 0, %s96
      %s111 = sphi 0, %s97
      %s115 = sphi 0, %s115
      %s117 = sphi 0, %s115
      %s118 = sphi 0, %s117
      %s132 = sphi 0, %s118
      %s136 = sphi 0, %s136
      %s138 = sphi 0, %s136
      %s139 = sphi 0, %s138
      %s153 = sphi 0, %s139
      %s159 = sphi 0, %s161
      %s162 = sphi 0, %s159
      %s163 = sphi 0, %s162
      %s179 = sphi 0, %s163
    $region4: #{tpu_custom_call.1} parent=1 // loop_header_branch
      %21 = sbr.rel (%p19) target = $region8
    $region5: #{tpu_custom_call.1} parent=1 // loop_body
      %s23 = ssub.s32 %s18, 1
      %s24 = ssub.s32 %s18, 2
      %s25 = sadd.s32 %s18, 1
      %s26 = ssub.s32 %s18, %s25
      %p27 = scmp.eq.s32.totalorder %s26, 0
      %s29 = sadd.s32 %s28, 1
      %s30 = scalar_select %p27, %s28, %s29
      %p33 = pneg %p27
      %p34 = scmp.eq.s32.totalorder %s18, 1
      %p35 = por %p33, %p34
      %p36 = scmp.ne.s32.totalorder %s28, %s31
      %p37 = scmp.eq.s32.totalorder %s18, 0
      %p38 = por %p36, %p37
      %p39 = scmp.ne.s32.totalorder %s28, %s31
      %p40 = scmp.eq.s32.totalorder %s23, 1
      %p41 = por %p39, %p40
      %p42 = scmp.ne.s32.totalorder %s31, %s32
      %p43 = scmp.eq.s32.totalorder %s23, 0
      %p44 = por %p42, %p43
      %p45 = scmp.ne.s32.totalorder %s31, %s32
      %p46 = scmp.eq.s32.totalorder %s24, 1
      %p47 = por %p45, %p46
      %p49 = scmp.ne.s32.totalorder %s32, %s48
      %p50 = scmp.eq.s32.totalorder %s24, 0
      %p51 = por %p49, %p50
      %s53 = sadd.s32 %s52, 1
      %p56 = scmp.eq.s32.totalorder %s18, 1
      %p57 = scmp.ne.s32.totalorder %s52, %s54
      %p58 = scmp.eq.s32.totalorder %s18, 0
      %p59 = por %p57, %p58
      %p60 = scmp.ne.s32.totalorder %s52, %s54
      %p61 = scmp.eq.s32.totalorder %s23, 1
      %p62 = por %p60, %p61
      %p63 = scmp.ne.s32.totalorder %s54, %s55
      %p64 = scmp.eq.s32.totalorder %s23, 0
      %p65 = por %p63, %p64
      %p66 = scmp.ne.s32.totalorder %s54, %s55
      %p67 = scmp.eq.s32.totalorder %s24, 1
      %p68 = por %p66, %p67
      %p70 = scmp.ne.s32.totalorder %s55, %s69
      %p71 = scmp.eq.s32.totalorder %s24, 0
      %p72 = por %p70, %p71
      %s74 = sadd.s32 %s73, 1
      %p77 = scmp.eq.s32.totalorder %s18, 1
      %p78 = scmp.ne.s32.totalorder %s73, %s75
      %p79 = scmp.eq.s32.totalorder %s18, 0
      %p80 = por %p78, %p79
      %p81 = scmp.ne.s32.totalorder %s73, %s75
      %p82 = scmp.eq.s32.totalorder %s23, 1
      %p83 = por %p81, %p82
      %p84 = scmp.ne.s32.totalorder %s75, %s76
      %p85 = scmp.eq.s32.totalorder %s23, 0
      %p86 = por %p84, %p85
      %p87 = scmp.ne.s32.totalorder %s75, %s76
      %p88 = scmp.eq.s32.totalorder %s24, 1
      %p89 = por %p87, %p88
      %p91 = scmp.ne.s32.totalorder %s76, %s90
      %p92 = scmp.eq.s32.totalorder %s24, 0
      %p93 = por %p91, %p92
      %s95 = sadd.s32 %s94, 1
      %p98 = scmp.eq.s32.totalorder %s18, 1
      %p99 = scmp.ne.s32.totalorder %s94, %s96
      %p100 = scmp.eq.s32.totalorder %s18, 0
      %p101 = por %p99, %p100
      %p102 = scmp.ne.s32.totalorder %s94, %s96
      %p103 = scmp.eq.s32.totalorder %s23, 1
      %p104 = por %p102, %p103
      %p105 = scmp.ne.s32.totalorder %s96, %s97
      %p106 = scmp.eq.s32.totalorder %s23, 0
      %p107 = por %p105, %p106
      %p108 = scmp.ne.s32.totalorder %s96, %s97
      %p109 = scmp.eq.s32.totalorder %s24, 1
      %p110 = por %p108, %p109
      %p112 = scmp.ne.s32.totalorder %s97, %s111
      %p113 = scmp.eq.s32.totalorder %s24, 0
      %p114 = por %p112, %p113
      %s116 = sadd.s32 %s115, 1
      %p119 = scmp.eq.s32.totalorder %s18, 1
      %p120 = scmp.ne.s32.totalorder %s115, %s117
      %p121 = scmp.eq.s32.totalorder %s18, 0
      %p122 = por %p120, %p121
      %p123 = scmp.ne.s32.totalorder %s115, %s117
      %p124 = scmp.eq.s32.totalorder %s23, 1
      %p125 = por %p123, %p124
      %p126 = scmp.ne.s32.totalorder %s117, %s118
      %p127 = scmp.eq.s32.totalorder %s23, 0
      %p128 = por %p126, %p127
      %p129 = scmp.ne.s32.totalorder %s117, %s118
      %p130 = scmp.eq.s32.totalorder %s24, 1
      %p131 = por %p129, %p130
      %p133 = scmp.ne.s32.totalorder %s118, %s132
      %p134 = scmp.eq.s32.totalorder %s24, 0
      %p135 = por %p133, %p134
      %s137 = sadd.s32 %s136, 1
      %p140 = scmp.eq.s32.totalorder %s18, 1
      %p141 = scmp.ne.s32.totalorder %s136, %s138
      %p142 = scmp.eq.s32.totalorder %s18, 0
      %p143 = por %p141, %p142
      %p144 = scmp.ne.s32.totalorder %s136, %s138
      %p145 = scmp.eq.s32.totalorder %s23, 1
      %p146 = por %p144, %p145
      %p147 = scmp.ne.s32.totalorder %s138, %s139
      %p148 = scmp.eq.s32.totalorder %s23, 0
      %p149 = por %p147, %p148
      %p150 = scmp.ne.s32.totalorder %s138, %s139
      %p151 = scmp.eq.s32.totalorder %s24, 1
      %p152 = por %p150, %p151
      %p154 = scmp.ne.s32.totalorder %s139, %s153
      %p155 = scmp.eq.s32.totalorder %s24, 0
      %p156 = por %p154, %p155
      %s157 = ssub.s32 %s18, %s25
      %p158 = scmp.eq.s32.totalorder %s157, 0
      %s160 = sadd.s32 %s159, 1
      %s161 = scalar_select %p158, %s159, %s160
      %p164 = pneg %p158
      %p165 = scmp.eq.s32.totalorder %s18, 1
      %p166 = por %p164, %p165
      %p167 = scmp.ne.s32.totalorder %s159, %s162
      %p168 = scmp.eq.s32.totalorder %s18, 0
      %p169 = por %p167, %p168
      %p170 = scmp.ne.s32.totalorder %s159, %s162
      %p171 = scmp.eq.s32.totalorder %s23, 1
      %p172 = por %p170, %p171
      %p173 = scmp.ne.s32.totalorder %s162, %s163
      %p174 = scmp.eq.s32.totalorder %s23, 0
      %p175 = por %p173, %p174
      %p176 = scmp.ne.s32.totalorder %s162, %s163
      %p177 = scmp.eq.s32.totalorder %s24, 1
      %p178 = por %p176, %p177
      %p180 = scmp.ne.s32.totalorder %s163, %s179
      %p181 = scmp.eq.s32.totalorder %s24, 0
      %p182 = por %p180, %p181
      %p183 = scmp.le.s32.totalorder 1, %s18
      %p184 = scmp.lt.s32.totalorder %s18, 3
      %p185 = pnand %p183, %p184
      %p186 = pneg %p185
      // Predicated region
      $region9: #{tpu_custom_call.1} parent=5 // pred_check
        _
      $region10: #{tpu_custom_call.1} parent=5 // pred_check_branch
        %188 = sbr.rel (%p185) target = $region12
      $region11: #{tpu_custom_call.1} parent=5 // pred_region
        %s189 = ssub.s32 %s18, 1
        // Predicated region
        $region13: #{tpu_custom_call.1} parent=11 // pred_check
          %p190 = pneg %p65
        $region14: #{tpu_custom_call.1} parent=11 // pred_check_branch
          %192 = sbr.rel (%p190) target = $region16
        $region15: #{tpu_custom_call.1} parent=11 // pred_region
          _
        $region16: #{tpu_custom_call.1} parent=11 // pred_fallthru
          _
        // Predicated region
        $region17: #{tpu_custom_call.1} parent=11 // pred_check
          %p193 = pneg %p86
        $region18: #{tpu_custom_call.1} parent=11 // pred_check_branch
          %195 = sbr.rel (%p193) target = $region20
        $region19: #{tpu_custom_call.1} parent=11 // pred_region
          _
        $region20: #{tpu_custom_call.1} parent=11 // pred_fallthru
          _
        // Predicated region
        $region21: #{tpu_custom_call.1} parent=11 // pred_check
          %p196 = pneg %p107
        $region22: #{tpu_custom_call.1} parent=11 // pred_check_branch
          %198 = sbr.rel (%p196) target = $region24
        $region23: #{tpu_custom_call.1} parent=11 // pred_region
          _
        $region24: #{tpu_custom_call.1} parent=11 // pred_fallthru
          _
        // Predicated region
        $region25: #{tpu_custom_call.1} parent=11 // pred_check
          %p199 = pneg %p128
        $region26: #{tpu_custom_call.1} parent=11 // pred_check_branch
          %201 = sbr.rel (%p199) target = $region28
        $region27: #{tpu_custom_call.1} parent=11 // pred_region
          _
        $region28: #{tpu_custom_call.1} parent=11 // pred_fallthru
          _
        // Predicated region
        $region29: #{tpu_custom_call.1} parent=11 // pred_check
          %p202 = pneg %p149
        $region30: #{tpu_custom_call.1} parent=11 // pred_check_branch
          %204 = sbr.rel (%p202) target = $region32
        $region31: #{tpu_custom_call.1} parent=11 // pred_region
          _
        $region32: #{tpu_custom_call.1} parent=11 // pred_fallthru
          _
      $region12: #{tpu_custom_call.1} parent=5 // pred_fallthru
        _
      %p205 = scmp.lt.s32.totalorder %s18, 2
      // Predicated region
      $region33: #{tpu_custom_call.1} parent=5 // pred_check
        %p206 = pneg %p205
      $region34: #{tpu_custom_call.1} parent=5 // pred_check_branch
        %208 = sbr.rel (%p206) target = $region36
      $region35: #{tpu_custom_call.1} parent=5 // pred_region
        // Predicated region
        $region37: #{tpu_custom_call.1} parent=35 // pred_check
          %p209 = pneg %p38
        $region38: #{tpu_custom_call.1} parent=35 // pred_check_branch
          %211 = sbr.rel (%p209) target = $region40
        $region39: #{tpu_custom_call.1} parent=35 // pred_region
          %s212 = sand.u32 %s28, 1
          %s213 = scalar_lea.sflag [#allocation3], %s212
          %s214 = sand.u32 %s28, 1
          %s215 = smul.addr %s214, 128
          %s216 = scalar_lea.vmem [#allocation2], %s215
          %s218 = ssub.s32 2048, 2048
          %219 = vsyncadd %s213, %s218
          %s220 = smul.addr %s18, 16
          %s221 = smul.addr %s220, 128
          %s222 = scalar_lea.hbm %s0, %s221
          %s223 = sshll.u32 %s216, 4
          %s224 = int_to_ptr.vmem [resolvable:$true] %s223
          %229 = dma.hbm_to_vmem [thread:$0]  %s222, 2048, %s224, %s213, 256, 256, 16
        $region40: #{tpu_custom_call.1} parent=35 // pred_fallthru
          _
      $region36: #{tpu_custom_call.1} parent=5 // pred_fallthru
        _
      %p230 = scmp.le.s32.totalorder 1, %s18
      %p231 = scmp.lt.s32.totalorder %s18, 3
      %p232 = pnand %p230, %p231
      %p233 = pneg %p232
      // Predicated region
      $region41: #{tpu_custom_call.1} parent=5 // pred_check
        _
      $region42: #{tpu_custom_call.1} parent=5 // pred_check_branch
        %235 = sbr.rel (%p232) target = $region44
      $region43: #{tpu_custom_call.1} parent=5 // pred_region
        %s236 = ssub.s32 %s18, 1
        %s237 = sand.u32 %s31, 1
        %s238 = scalar_lea.sflag [#allocation3], %s237
        %s239 = sand.u32 %s31, 1
        %s240 = smul.addr %s239, 128
        %s241 = scalar_lea.vmem [#allocation2], %s240
        // Predicated region
        $region45: #{tpu_custom_call.1} parent=43 // pred_check
          %p242 = pneg %p44
        $region46: #{tpu_custom_call.1} parent=43 // pred_check_branch
          %244 = sbr.rel (%p242) target = $region48
        $region47: #{tpu_custom_call.1} parent=43 // pred_region
          %245 = dma.done %s238, 2048
        $region48: #{tpu_custom_call.1} parent=43 // pred_fallthru
          _
        %s246 = sand.u32 %s31, 1
        %s247 = scalar_lea.sflag [#allocation3], %s246
        %s248 = sand.u32 %s31, 1
        %s249 = smul.addr %s248, 128
        %s250 = scalar_lea.vmem [#allocation2], %s249
        %p251 = pneg %p44
        %p252 = pneg %p41
        %p253 = pneg %p65
        %p254 = pneg %p62
        %p255 = pneg %p86
        %p256 = pneg %p83
        %p257 = pneg %p107
        %p258 = pneg %p104
        %p259 = pneg %p128
        %p260 = pneg %p125
        %p261 = pneg %p149
        %p262 = pneg %p146
        %p263 = pneg %p175
        %p264 = pneg %p172
        %s265 = sand.u32 %s162, 1
        %s266 = scalar_lea.sflag [#allocation4], %s265
        %s267 = sand.u32 %s162, 1
        %s268 = smul.addr %s267, 8
        %s269 = scalar_lea.vmem [#allocation5], %s268
        %v271 = vld [vmem:[%s241] sm:$0xff]
        %v272 = vld [vmem:[%s241 + $0x8] sm:$0xff]
        %v273 = vld [vmem:[%s241 + $0x10] sm:$0xff]
        %v274 = vld [vmem:[%s241 + $0x18] sm:$0xff]
        %v275 = vld [vmem:[%s241 + $0x20] sm:$0xff]
        %v276 = vld [vmem:[%s241 + $0x28] sm:$0xff]
        %v277 = vld [vmem:[%s241 + $0x30] sm:$0xff]
        %v278 = vld [vmem:[%s241 + $0x38] sm:$0xff]
        %v279 = vld [vmem:[%s241 + $0x40] sm:$0xff]
        %v280 = vld [vmem:[%s241 + $0x48] sm:$0xff]
        %v281 = vld [vmem:[%s241 + $0x50] sm:$0xff]
        %v282 = vld [vmem:[%s241 + $0x58] sm:$0xff]
        %v283 = vld [vmem:[%s241 + $0x60] sm:$0xff]
        %v284 = vld [vmem:[%s241 + $0x68] sm:$0xff]
        %v285 = vld [vmem:[%s241 + $0x70] sm:$0xff]
        %v286 = vld [vmem:[%s241 + $0x78] sm:$0xff]
        %v287 = vadd.f32 %v271, %v272
        %288 = vadd.xlane.f32.xlu0 %v287
        %v289 = vpop.xlane.xlu0 %288
        %v290 = vadd.f32 %v273, %v274
        %291 = vadd.xlane.f32.xlu0 %v290
        %v292 = vpop.xlane.xlu0 %291
        %v293 = vadd.f32 %v275, %v276
        %294 = vadd.xlane.f32.xlu0 %v293
        %v295 = vpop.xlane.xlu0 %294
        %v296 = vadd.f32 %v277, %v278
        %297 = vadd.xlane.f32.xlu0 %v296
        %v298 = vpop.xlane.xlu0 %297
        %v299 = vadd.f32 %v279, %v280
        %300 = vadd.xlane.f32.xlu0 %v299
        %v301 = vpop.xlane.xlu0 %300
        %v302 = vadd.f32 %v281, %v282
        %303 = vadd.xlane.f32.xlu0 %v302
        %v304 = vpop.xlane.xlu0 %303
        %v305 = vadd.f32 %v283, %v284
        %306 = vadd.xlane.f32.xlu0 %v305
        %v307 = vpop.xlane.xlu0 %306
        %v308 = vadd.f32 %v285, %v286
        %309 = vadd.xlane.f32.xlu0 %v308
        %v310 = vpop.xlane.xlu0 %309
        %v311 = vmul.f32 %v271, %v271
        %v312 = vmul.f32 %v272, %v272
        %v313 = vmul.f32 %v273, %v273
        %v314 = vmul.f32 %v274, %v274
        %v315 = vmul.f32 %v275, %v275
        %v316 = vmul.f32 %v276, %v276
        %v317 = vmul.f32 %v277, %v277
        %v318 = vmul.f32 %v278, %v278
        %v319 = vmul.f32 %v279, %v279
        %v320 = vmul.f32 %v280, %v280
        %v321 = vmul.f32 %v281, %v281
        %v322 = vmul.f32 %v282, %v282
        %v323 = vmul.f32 %v283, %v283
        %v324 = vmul.f32 %v284, %v284
        %v325 = vmul.f32 %v285, %v285
        %v326 = vmul.f32 %v286, %v286
        %v327 = vadd.f32 %v311, %v312
        %328 = vadd.xlane.f32.xlu0 %v327
        %v329 = vpop.xlane.xlu0 %328
        %v330 = vadd.f32 %v313, %v314
        %331 = vadd.xlane.f32.xlu0 %v330
        %v332 = vpop.xlane.xlu0 %331
        %v333 = vadd.f32 %v315, %v316
        %334 = vadd.xlane.f32.xlu0 %v333
        %v335 = vpop.xlane.xlu0 %334
        %v336 = vadd.f32 %v317, %v318
        %337 = vadd.xlane.f32.xlu0 %v336
        %v338 = vpop.xlane.xlu0 %337
        %v339 = vadd.f32 %v319, %v320
        %340 = vadd.xlane.f32.xlu0 %v339
        %v341 = vpop.xlane.xlu0 %340
        %v342 = vadd.f32 %v321, %v322
        %343 = vadd.xlane.f32.xlu0 %v342
        %v344 = vpop.xlane.xlu0 %343
        %v345 = vadd.f32 %v323, %v324
        %346 = vadd.xlane.f32.xlu0 %v345
        %v347 = vpop.xlane.xlu0 %346
        %v348 = vadd.f32 %v325, %v326
        %349 = vadd.xlane.f32.xlu0 %v348
        %v350 = vpop.xlane.xlu0 %349
        %v351 = vlaneseq
        %v352 = vand.u32 %v351, 127
        %v353 = vlaneseq
        %v354 = vshrl.u32 %v353, 7
        %v355 = vadd.s32 %v354, 8
        %v356 = vadd.s32 %v354, 16
        %v357 = vadd.s32 %v354, 24
        %v358 = vmul.u32 %v354, 2
        %v359 = vmul.u32 %v355, 2
        %v360 = vmul.u32 %v356, 2
        %v361 = vmul.u32 %v357, 2
        %vm362 = vcmp.ge.s32.totalorder %v352, %v358
        %vm363 = vcmp.ge.s32.totalorder %v352, %v359
        %vm364 = vcmp.ge.s32.totalorder %v352, %v360
        %vm365 = vcmp.ge.s32.totalorder %v352, %v361
        %v366 = vadd.s32 %v354, 1
        %v367 = vadd.s32 %v355, 1
        %v368 = vadd.s32 %v356, 1
        %v369 = vadd.s32 %v357, 1
        %v370 = vmul.u32 %v366, 2
        %v371 = vmul.u32 %v367, 2
        %v372 = vmul.u32 %v368, 2
        %v373 = vmul.u32 %v369, 2
        %vm374 = vcmp.lt.s32.totalorder %v352, %v370
        %vm375 = vcmp.lt.s32.totalorder %v352, %v371
        %vm376 = vcmp.lt.s32.totalorder %v352, %v372
        %vm377 = vcmp.lt.s32.totalorder %v352, %v373
        %vm378 = vmand %vm362, %vm374
        %vm379 = vmand %vm363, %vm375
        %vm380 = vmand %vm364, %vm376
        %vm381 = vmand %vm365, %vm377
        %v382 = vsel %vm378, 1, 0
        %v383 = vsel %vm379, 1, 0
        %v384 = vsel %vm380, 1, 0
        %v385 = vsel %vm381, 1, 0
        %v386 = vcvt.s32.f32 %v382
        %v387 = vcvt.s32.f32 %v383
        %v388 = vcvt.s32.f32 %v384
        %v389 = vcvt.s32.f32 %v385
        %v390 = vadd.s32 %v354, 32
        %v391 = vadd.s32 %v354, 40
        %v392 = vadd.s32 %v354, 48
        %v393 = vadd.s32 %v354, 56
        %v394 = vmul.u32 %v352, 2
        %vm395 = vcmp.ge.s32.totalorder %v354, %v394
        %vm396 = vcmp.ge.s32.totalorder %v355, %v394
        %vm397 = vcmp.ge.s32.totalorder %v356, %v394
        %vm398 = vcmp.ge.s32.totalorder %v357, %v394
        %vm399 = vcmp.ge.s32.totalorder %v390, %v394
        %vm400 = vcmp.ge.s32.totalorder %v391, %v394
        %vm401 = vcmp.ge.s32.totalorder %v392, %v394
        %vm402 = vcmp.ge.s32.totalorder %v393, %v394
        %v403 = vadd.s32 %v352, 1
        %v404 = vmul.u32 %v403, 2
        %vm405 = vcmp.lt.s32.totalorder %v354, %v404
        %vm406 = vcmp.lt.s32.totalorder %v355, %v404
        %vm407 = vcmp.lt.s32.totalorder %v356, %v404
        %vm408 = vcmp.lt.s32.totalorder %v357, %v404
        %vm409 = vcmp.lt.s32.totalorder %v390, %v404
        %vm410 = vcmp.lt.s32.totalorder %v391, %v404
        %vm411 = vcmp.lt.s32.totalorder %v392, %v404
        %vm412 = vcmp.lt.s32.totalorder %v393, %v404
        %vm413 = vmand %vm395, %vm405
        %vm414 = vmand %vm396, %vm406
        %vm415 = vmand %vm397, %vm407
        %vm416 = vmand %vm398, %vm408
        %vm417 = vmand %vm399, %vm409
        %vm418 = vmand %vm400, %vm410
        %vm419 = vmand %vm401, %vm411
        %vm420 = vmand %vm402, %vm412
        %v421 = vsel %vm413, 1, 0
        %v422 = vsel %vm414, 1, 0
        %v423 = vsel %vm415, 1, 0
        %v424 = vsel %vm416, 1, 0
        %v425 = vsel %vm417, 1, 0
        %v426 = vsel %vm418, 1, 0
        %v427 = vsel %vm419, 1, 0
        %v428 = vsel %vm420, 1, 0
        %v429 = vcvt.s32.f32 %v421
        %v430 = vcvt.s32.f32 %v422
        %v431 = vcvt.s32.f32 %v423
        %v432 = vcvt.s32.f32 %v424
        %v433 = vcvt.s32.f32 %v425
        %v434 = vcvt.s32.f32 %v426
        %v435 = vcvt.s32.f32 %v427
        %v436 = vcvt.s32.f32 %v428
        %vm437 = vcmask 523264
        %v439 = vsel %vm437, %v386, 0
        %v442 = vsel %vm437, %v387, 0
        %v445 = vsel %vm437, %v388, 0
        %v448 = vsel %vm437, %v389, 0
        %450 = vmatprep.subr.mxu0 0.0
        %451 = vmatpush1.msra.mxu0 %v289
        %452 = vmatprep.subr.mxu0 0.0
        %453 = vmatpush1.msra.mxu0 %v292
        %454 = vmatprep.subr.mxu0 0.0
        %455 = vmatpush1.msra.mxu0 %v295
        %456 = vmatprep.subr.mxu0 0.0
        %457 = vmatpush1.msra.mxu0 %v298
        %458 = vmatprep.subr.mxu0 0.0
        %459 = vmatpush1.msra.mxu0 %v301
        %460 = vmatprep.subr.mxu0 0.0
        %461 = vmatpush1.msra.mxu0 %v304
        %462 = vmatprep.subr.mxu0 0.0
        %463 = vmatpush1.msra.mxu0 %v307
        %464 = vmatprep.subr.mxu0 0.0
        %465 = vmatpush1.msra.mxu0 %v310
        %466 = vmatprep.subr.mxu0 0.0
        %467 = vmatpush1.msra.mxu0 0.0
        %468 = vmatprep.subr.mxu0 0.0
        %469 = vmatpush1.msra.mxu0 0.0
        %470 = vmatprep.subr.mxu0 0.0
        %471 = vmatpush1.msra.mxu0 0.0
        %472 = vmatprep.subr.mxu0 0.0
        %473 = vmatpush1.msra.mxu0 0.0
        %474 = vmatprep.subr.mxu0 0.0
        %475 = vmatpush1.msra.mxu0 0.0
        %476 = vmatprep.subr.mxu0 0.0
        %477 = vmatpush1.msra.mxu0 0.0
        %478 = vmatprep.subr.mxu0 0.0
        %479 = vmatpush1.msra.mxu0 0.0
        %480 = vmatprep.subr.mxu0 0.0
        %481 = vmatpush1.msra.mxu0 0.0
        %482 = vmatprep.subr.mxu0 0.0
        %483 = vmatpush1.msra.mxu0 0.0
        %484 = vmatprep.subr.mxu0 0.0
        %485 = vmatpush1.msra.mxu0 0.0
        %486 = vmatprep.subr.mxu0 0.0
        %487 = vmatpush1.msra.mxu0 0.0
        %488 = vmatprep.subr.mxu0 0.0
        %489 = vmatpush1.msra.mxu0 0.0
        %490 = vmatprep.subr.mxu0 0.0
        %491 = vmatpush1.msra.mxu0 0.0
        %492 = vmatprep.subr.mxu0 0.0
        %493 = vmatpush1.msra.mxu0 0.0
        %494 = vmatprep.subr.mxu0 0.0
        %495 = vmatpush1.msra.mxu0 0.0
        %496 = vmatprep.subr.mxu0 0.0
        %497 = vmatpush1.msra.mxu0 0.0
        %498 = vmatprep.subr.mxu0 0.0
        %499 = vmatpush1.msra.mxu0 0.0
        %500 = vmatprep.subr.mxu0 0.0
        %501 = vmatpush1.msra.mxu0 0.0
        %502 = vmatprep.subr.mxu0 0.0
        %503 = vmatpush1.msra.mxu0 0.0
        %504 = vmatprep.subr.mxu0 0.0
        %505 = vmatpush1.msra.mxu0 0.0
        %506 = vmatprep.subr.mxu0 0.0
        %507 = vmatpush1.msra.mxu0 0.0
        %508 = vmatprep.subr.mxu0 0.0
        %509 = vmatpush1.msra.mxu0 0.0
        %510 = vmatprep.subr.mxu0 0.0
        %511 = vmatpush1.msra.mxu0 0.0
        %512 = vmatprep.subr.mxu0 0.0
        %513 = vmatpush1.msra.mxu0 0.0
        %514 = vmatprep.mubr.f32.mxu0 0.0
        %515 = vmatmul.mubr.f32.gmra.mrb[0].mxu0 %v439
        %v516 = vpop.f32.mrb[0].mxu0
        %v517 = vadd.f32 0.0, %v516
        %v518 = vpop.f32.mrb[0].mxu0
        %519 = vmatprep.mubr.f32.mxu0 0.0
        %520 = vmatmul.mubr.f32.gmra.mrb[0].mxu0 %v442
        %v521 = vpop.f32.mrb[0].mxu0
        %v522 = vadd.f32 0.0, %v521
        %v523 = vpop.f32.mrb[0].mxu0
        %524 = vmatprep.mubr.f32.mxu0 0.0
        %525 = vmatmul.mubr.f32.gmra.mrb[0].mxu0 %v445
        %v526 = vpop.f32.mrb[0].mxu0
        %v527 = vadd.f32 0.0, %v526
        %v528 = vpop.f32.mrb[0].mxu0
        %529 = vmatprep.mubr.f32.mxu0 0.0
        %530 = vmatmul.mubr.f32.gmra.mrb[0].mxu0 %v448
        %v531 = vpop.f32.mrb[0].mxu0
        %v532 = vadd.f32 0.0, %v531
        %v533 = vpop.f32.mrb[0].mxu0
        %534 = vdwg.mxu0
        %535 = vmatprep.subr.mxu0 0.0
        %536 = vmatpush1.msra.mxu0 %v329
        %537 = vmatprep.subr.mxu0 0.0
        %538 = vmatpush1.msra.mxu0 %v332
        %539 = vmatprep.subr.mxu0 0.0
        %540 = vmatpush1.msra.mxu0 %v335
        %541 = vmatprep.subr.mxu0 0.0
        %542 = vmatpush1.msra.mxu0 %v338
        %543 = vmatprep.subr.mxu0 0.0
        %544 = vmatpush1.msra.mxu0 %v341
        %545 = vmatprep.subr.mxu0 0.0
        %546 = vmatpush1.msra.mxu0 %v344
        %547 = vmatprep.subr.mxu0 0.0
        %548 = vmatpush1.msra.mxu0 %v347
        %549 = vmatprep.subr.mxu0 0.0
        %550 = vmatpush1.msra.mxu0 %v350
        %551 = vmatprep.subr.mxu0 0.0
        %552 = vmatpush1.msra.mxu0 0.0
        %553 = vmatprep.subr.mxu0 0.0
        %554 = vmatpush1.msra.mxu0 0.0
        %555 = vmatprep.subr.mxu0 0.0
        %556 = vmatpush1.msra.mxu0 0.0
        %557 = vmatprep.subr.mxu0 0.0
        %558 = vmatpush1.msra.mxu0 0.0
        %559 = vmatprep.subr.mxu0 0.0
        %560 = vmatpush1.msra.mxu0 0.0
        %561 = vmatprep.subr.mxu0 0.0
        %562 = vmatpush1.msra.mxu0 0.0
        %563 = vmatprep.subr.mxu0 0.0
        %564 = vmatpush1.msra.mxu0 0.0
        %565 = vmatprep.subr.mxu0 0.0
        %566 = vmatpush1.msra.mxu0 0.0
        %567 = vmatprep.subr.mxu0 0.0
        %568 = vmatpush1.msra.mxu0 0.0
        %569 = vmatprep.subr.mxu0 0.0
        %570 = vmatpush1.msra.mxu0 0.0
        %571 = vmatprep.subr.mxu0 0.0
        %572 = vmatpush1.msra.mxu0 0.0
        %573 = vmatprep.subr.mxu0 0.0
        %574 = vmatpush1.msra.mxu0 0.0
        %575 = vmatprep.subr.mxu0 0.0
        %576 = vmatpush1.msra.mxu0 0.0
        %577 = vmatprep.subr.mxu0 0.0
        %578 = vmatpush1.msra.mxu0 0.0
        %579 = vmatprep.subr.mxu0 0.0
        %580 = vmatpush1.msra.mxu0 0.0
        %581 = vmatprep.subr.mxu0 0.0
        %582 = vmatpush1.msra.mxu0 0.0
        %583 = vmatprep.subr.mxu0 0.0
        %584 = vmatpush1.msra.mxu0 0.0
        %585 = vmatprep.subr.mxu0 0.0
        %586 = vmatpush1.msra.mxu0 0.0
        %587 = vmatprep.subr.mxu0 0.0
        %588 = vmatpush1.msra.mxu0 0.0
        %589 = vmatprep.subr.mxu0 0.0
        %590 = vmatpush1.msra.mxu0 0.0
        %591 = vmatprep.subr.mxu0 0.0
        %592 = vmatpush1.msra.mxu0 0.0
        %593 = vmatprep.subr.mxu0 0.0
        %594 = vmatpush1.msra.mxu0 0.0
        %595 = vmatprep.subr.mxu0 0.0
        %596 = vmatpush1.msra.mxu0 0.0
        %597 = vmatprep.subr.mxu0 0.0
        %598 = vmatpush1.msra.mxu0 0.0
        %599 = vmatprep.mubr.f32.mxu0 0.0
        %600 = vmatmul.mubr.f32.gmra.mrb[0].mxu0 %v439
        %v601 = vpop.f32.mrb[0].mxu0
        %v602 = vadd.f32 0.0, %v601
        %v603 = vpop.f32.mrb[0].mxu0
        %604 = vmatprep.mubr.f32.mxu0 0.0
        %605 = vmatmul.mubr.f32.gmra.mrb[0].mxu0 %v442
        %v606 = vpop.f32.mrb[0].mxu0
        %v607 = vadd.f32 0.0, %v606
        %v608 = vpop.f32.mrb[0].mxu0
        %609 = vmatprep.mubr.f32.mxu0 0.0
        %610 = vmatmul.mubr.f32.gmra.mrb[0].mxu0 %v445
        %v611 = vpop.f32.mrb[0].mxu0
        %v612 = vadd.f32 0.0, %v611
        %v613 = vpop.f32.mrb[0].mxu0
        %614 = vmatprep.mubr.f32.mxu0 0.0
        %615 = vmatmul.mubr.f32.gmra.mrb[0].mxu0 %v448
        %v616 = vpop.f32.mrb[0].mxu0
        %v617 = vadd.f32 0.0, %v616
        %v618 = vpop.f32.mrb[0].mxu0
        %619 = vdwg.mxu0
        %v620 = vmul.f32 %v517, 0.001953125
        %v621 = vmul.f32 %v522, 0.001953125
        %v622 = vmul.f32 %v527, 0.001953125
        %v623 = vmul.f32 %v532, 0.001953125
        %v624 = vmul.f32 %v602, 0.001953125
        %v625 = vmul.f32 %v607, 0.001953125
        %v626 = vmul.f32 %v612, 0.001953125
        %v627 = vmul.f32 %v617, 0.001953125
        %v628 = vmul.f32 %v620, %v620
        %v629 = vmul.f32 %v621, %v621
        %v630 = vmul.f32 %v622, %v622
        %v631 = vmul.f32 %v623, %v623
        %v632 = vsub.f32 %v624, %v628
        %v633 = vsub.f32 %v625, %v629
        %v634 = vsub.f32 %v626, %v630
        %v635 = vsub.f32 %v627, %v631
        %v636 = vadd.f32 %v632, 1e-05
        %v637 = vadd.f32 %v633, 1e-05
        %v638 = vadd.f32 %v634, 1e-05
        %v639 = vadd.f32 %v635, 1e-05
        %v640 = vrsqrt.pop %v636
        %v641 = vrsqrt.pop %v637
        %v642 = vrsqrt.pop %v638
        %v643 = vrsqrt.pop %v639
        %vm644 = vcmask 261120
        %v646 = vsel %vm644, %v429, 0
        %v649 = vsel %vm644, %v430, 0
        %v652 = vsel %vm644, %v431, 0
        %v655 = vsel %vm644, %v432, 0
        %v658 = vsel %vm644, %v433, 0
        %v661 = vsel %vm644, %v434, 0
        %v664 = vsel %vm644, %v435, 0
        %v667 = vsel %vm644, %v436, 0
        %669 = vmatprep.subr.mxu0 0.0
        %670 = vmatpush1.msra.mxu0 %v620
        %671 = vmatprep.subr.mxu0 0.0
        %672 = vmatpush1.msra.mxu0 %v621
        %673 = vmatprep.subr.mxu0 0.0
        %674 = vmatpush1.msra.mxu0 %v622
        %675 = vmatprep.subr.mxu0 0.0
        %676 = vmatpush1.msra.mxu0 %v623
        %677 = vmatprep.subr.mxu0 0.0
        %678 = vmatpush1.msra.mxu0 0.0
        %679 = vmatprep.subr.mxu0 0.0
        %680 = vmatpush1.msra.mxu0 0.0
        %681 = vmatprep.subr.mxu0 0.0
        %682 = vmatpush1.msra.mxu0 0.0
        %683 = vmatprep.subr.mxu0 0.0
        %684 = vmatpush1.msra.mxu0 0.0
        %685 = vmatprep.subr.mxu0 0.0
        %686 = vmatpush1.msra.mxu0 0.0
        %687 = vmatprep.subr.mxu0 0.0
        %688 = vmatpush1.msra.mxu0 0.0
        %689 = vmatprep.subr.mxu0 0.0
        %690 = vmatpush1.msra.mxu0 0.0
        %691 = vmatprep.subr.mxu0 0.0
        %692 = vmatpush1.msra.mxu0 0.0
        %693 = vmatprep.subr.mxu0 0.0
        %694 = vmatpush1.msra.mxu0 0.0
        %695 = vmatprep.subr.mxu0 0.0
        %696 = vmatpush1.msra.mxu0 0.0
        %697 = vmatprep.subr.mxu0 0.0
        %698 = vmatpush1.msra.mxu0 0.0
        %699 = vmatprep.subr.mxu0 0.0
        %700 = vmatpush1.msra.mxu0 0.0
        %701 = vmatprep.subr.mxu0 0.0
        %702 = vmatpush1.msra.mxu0 0.0
        %703 = vmatprep.subr.mxu0 0.0
        %704 = vmatpush1.msra.mxu0 0.0
        %705 = vmatprep.subr.mxu0 0.0
        %706 = vmatpush1.msra.mxu0 0.0
        %707 = vmatprep.subr.mxu0 0.0
        %708 = vmatpush1.msra.mxu0 0.0
        %709 = vmatprep.subr.mxu0 0.0
        %710 = vmatpush1.msra.mxu0 0.0
        %711 = vmatprep.subr.mxu0 0.0
        %712 = vmatpush1.msra.mxu0 0.0
        %713 = vmatprep.subr.mxu0 0.0
        %714 = vmatpush1.msra.mxu0 0.0
        %715 = vmatprep.subr.mxu0 0.0
        %716 = vmatpush1.msra.mxu0 0.0
        %717 = vmatprep.subr.mxu0 0.0
        %718 = vmatpush1.msra.mxu0 0.0
        %719 = vmatprep.subr.mxu0 0.0
        %720 = vmatpush1.msra.mxu0 0.0
        %721 = vmatprep.subr.mxu0 0.0
        %722 = vmatpush1.msra.mxu0 0.0
        %723 = vmatprep.subr.mxu0 0.0
        %724 = vmatpush1.msra.mxu0 0.0
        %725 = vmatprep.subr.mxu0 0.0
        %726 = vmatpush1.msra.mxu0 0.0
        %727 = vmatprep.subr.mxu0 0.0
        %728 = vmatpush1.msra.mxu0 0.0
        %729 = vmatprep.subr.mxu0 0.0
        %730 = vmatpush1.msra.mxu0 0.0
        %731 = vmatprep.subr.mxu0 0.0
        %732 = vmatpush1.msra.mxu0 0.0
        %733 = vmatprep.mubr.f32.mxu0 0.0
        %734 = vmatmul.mubr.f32.gmra.mrb[0].mxu0 %v646
        %v735 = vpop.f32.mrb[0].mxu0
        %v736 = vadd.f32 0.0, %v735
        %v737 = vpop.f32.mrb[0].mxu0
        %738 = vmatprep.mubr.f32.mxu0 0.0
        %739 = vmatmul.mubr.f32.gmra.mrb[0].mxu0 %v649
        %v740 = vpop.f32.mrb[0].mxu0
        %v741 = vadd.f32 0.0, %v740
        %v742 = vpop.f32.mrb[0].mxu0
        %743 = vmatprep.mubr.f32.mxu0 0.0
        %744 = vmatmul.mubr.f32.gmra.mrb[0].mxu0 %v652
        %v745 = vpop.f32.mrb[0].mxu0
        %v746 = vadd.f32 0.0, %v745
        %v747 = vpop.f32.mrb[0].mxu0
        %748 = vmatprep.mubr.f32.mxu0 0.0
        %749 = vmatmul.mubr.f32.gmra.mrb[0].mxu0 %v655
        %v750 = vpop.f32.mrb[0].mxu0
        %v751 = vadd.f32 0.0, %v750
        %v752 = vpop.f32.mrb[0].mxu0
        %753 = vmatprep.mubr.f32.mxu0 0.0
        %754 = vmatmul.mubr.f32.gmra.mrb[0].mxu0 %v658
        %v755 = vpop.f32.mrb[0].mxu0
        %v756 = vadd.f32 0.0, %v755
        %v757 = vpop.f32.mrb[0].mxu0
        %758 = vmatprep.mubr.f32.mxu0 0.0
        %759 = vmatmul.mubr.f32.gmra.mrb[0].mxu0 %v661
        %v760 = vpop.f32.mrb[0].mxu0
        %v761 = vadd.f32 0.0, %v760
        %v762 = vpop.f32.mrb[0].mxu0
        %763 = vmatprep.mubr.f32.mxu0 0.0
        %764 = vmatmul.mubr.f32.gmra.mrb[0].mxu0 %v664
        %v765 = vpop.f32.mrb[0].mxu0
        %v766 = vadd.f32 0.0, %v765
        %v767 = vpop.f32.mrb[0].mxu0
        %768 = vmatprep.mubr.f32.mxu0 0.0
        %769 = vmatmul.mubr.f32.gmra.mrb[0].mxu0 %v667
        %v770 = vpop.f32.mrb[0].mxu0
        %v771 = vadd.f32 0.0, %v770
        %v772 = vpop.f32.mrb[0].mxu0
        %773 = vdwg.mxu0
        %774 = vmatprep.subr.mxu0 0.0
        %775 = vmatpush1.msra.mxu0 %v640
        %776 = vmatprep.subr.mxu0 0.0
        %777 = vmatpush1.msra.mxu0 %v641
        %778 = vmatprep.subr.mxu0 0.0
        %779 = vmatpush1.msra.mxu0 %v642
        %780 = vmatprep.subr.mxu0 0.0
        %781 = vmatpush1.msra.mxu0 %v643
        %782 = vmatprep.subr.mxu0 0.0
        %783 = vmatpush1.msra.mxu0 0.0
        %784 = vmatprep.subr.mxu0 0.0
        %785 = vmatpush1.msra.mxu0 0.0
        %786 = vmatprep.subr.mxu0 0.0
        %787 = vmatpush1.msra.mxu0 0.0
        %788 = vmatprep.subr.mxu0 0.0
        %789 = vmatpush1.msra.mxu0 0.0
        %790 = vmatprep.subr.mxu0 0.0
        %791 = vmatpush1.msra.mxu0 0.0
        %792 = vmatprep.subr.mxu0 0.0
        %793 = vmatpush1.msra.mxu0 0.0
        %794 = vmatprep.subr.mxu0 0.0
        %795 = vmatpush1.msra.mxu0 0.0
        %796 = vmatprep.subr.mxu0 0.0
        %797 = vmatpush1.msra.mxu0 0.0
        %798 = vmatprep.subr.mxu0 0.0
        %799 = vmatpush1.msra.mxu0 0.0
        %800 = vmatprep.subr.mxu0 0.0
        %801 = vmatpush1.msra.mxu0 0.0
        %802 = vmatprep.subr.mxu0 0.0
        %803 = vmatpush1.msra.mxu0 0.0
        %804 = vmatprep.subr.mxu0 0.0
        %805 = vmatpush1.msra.mxu0 0.0
        %806 = vmatprep.subr.mxu0 0.0
        %807 = vmatpush1.msra.mxu0 0.0
        %808 = vmatprep.subr.mxu0 0.0
        %809 = vmatpush1.msra.mxu0 0.0
        %810 = vmatprep.subr.mxu0 0.0
        %811 = vmatpush1.msra.mxu0 0.0
        %812 = vmatprep.subr.mxu0 0.0
        %813 = vmatpush1.msra.mxu0 0.0
        %814 = vmatprep.subr.mxu0 0.0
        %815 = vmatpush1.msra.mxu0 0.0
        %816 = vmatprep.subr.mxu0 0.0
        %817 = vmatpush1.msra.mxu0 0.0
        %818 = vmatprep.subr.mxu0 0.0
        %819 = vmatpush1.msra.mxu0 0.0
        %820 = vmatprep.subr.mxu0 0.0
        %821 = vmatpush1.msra.mxu0 0.0
        %822 = vmatprep.subr.mxu0 0.0
        %823 = vmatpush1.msra.mxu0 0.0
        %824 = vmatprep.subr.mxu0 0.0
        %825 = vmatpush1.msra.mxu0 0.0
        %826 = vmatprep.subr.mxu0 0.0
        %827 = vmatpush1.msra.mxu0 0.0
        %828 = vmatprep.subr.mxu0 0.0
        %829 = vmatpush1.msra.mxu0 0.0
        %830 = vmatprep.subr.mxu0 0.0
        %831 = vmatpush1.msra.mxu0 0.0
        %832 = vmatprep.subr.mxu0 0.0
        %833 = vmatpush1.msra.mxu0 0.0
        %834 = vmatprep.subr.mxu0 0.0
        %835 = vmatpush1.msra.mxu0 0.0
        %836 = vmatprep.subr.mxu0 0.0
        %837 = vmatpush1.msra.mxu0 0.0
        %838 = vmatprep.mubr.f32.mxu0 0.0
        %839 = vmatmul.mubr.f32.gmra.mrb[0].mxu0 %v646
        %v840 = vpop.f32.mrb[0].mxu0
        %v841 = vadd.f32 0.0, %v840
        %v842 = vpop.f32.mrb[0].mxu0
        %843 = vmatprep.mubr.f32.mxu0 0.0
        %844 = vmatmul.mubr.f32.gmra.mrb[0].mxu0 %v649
        %v845 = vpop.f32.mrb[0].mxu0
        %v846 = vadd.f32 0.0, %v845
        %v847 = vpop.f32.mrb[0].mxu0
        %848 = vmatprep.mubr.f32.mxu0 0.0
        %849 = vmatmul.mubr.f32.gmra.mrb[0].mxu0 %v652
        %v850 = vpop.f32.mrb[0].mxu0
        %v851 = vadd.f32 0.0, %v850
        %v852 = vpop.f32.mrb[0].mxu0
        %853 = vmatprep.mubr.f32.mxu0 0.0
        %854 = vmatmul.mubr.f32.gmra.mrb[0].mxu0 %v655
        %v855 = vpop.f32.mrb[0].mxu0
        %v856 = vadd.f32 0.0, %v855
        %v857 = vpop.f32.mrb[0].mxu0
        %858 = vmatprep.mubr.f32.mxu0 0.0
        %859 = vmatmul.mubr.f32.gmra.mrb[0].mxu0 %v658
        %v860 = vpop.f32.mrb[0].mxu0
        %v861 = vadd.f32 0.0, %v860
        %v862 = vpop.f32.mrb[0].mxu0
        %863 = vmatprep.mubr.f32.mxu0 0.0
        %864 = vmatmul.mubr.f32.gmra.mrb[0].mxu0 %v661
        %v865 = vpop.f32.mrb[0].mxu0
        %v866 = vadd.f32 0.0, %v865
        %v867 = vpop.f32.mrb[0].mxu0
        %868 = vmatprep.mubr.f32.mxu0 0.0
        %869 = vmatmul.mubr.f32.gmra.mrb[0].mxu0 %v664
        %v870 = vpop.f32.mrb[0].mxu0
        %v871 = vadd.f32 0.0, %v870
        %v872 = vpop.f32.mrb[0].mxu0
        %873 = vmatprep.mubr.f32.mxu0 0.0
        %874 = vmatmul.mubr.f32.gmra.mrb[0].mxu0 %v667
        %v875 = vpop.f32.mrb[0].mxu0
        %v876 = vadd.f32 0.0, %v875
        %v877 = vpop.f32.mrb[0].mxu0
        %878 = vdwg.mxu0
        %v879 = vld [vmem:[%s2] sm:$0xff]
        %v880 = vld [vmem:[%s2 + $0x8] sm:$0xff]
        %v881 = vld [vmem:[%s2 + $0x10] sm:$0xff]
        %v882 = vld [vmem:[%s2 + $0x18] sm:$0xff]
        %v883 = vld [vmem:[%s2 + $0x20] sm:$0xff]
        %v884 = vld [vmem:[%s2 + $0x28] sm:$0xff]
        %v885 = vld [vmem:[%s2 + $0x30] sm:$0xff]
        %v886 = vld [vmem:[%s2 + $0x38] sm:$0xff]
        %v887 = vmul.f32 %v841, %v879
        %v888 = vmul.f32 %v846, %v880
        %v889 = vmul.f32 %v851, %v881
        %v890 = vmul.f32 %v856, %v882
        %v891 = vmul.f32 %v861, %v883
        %v892 = vmul.f32 %v866, %v884
        %v893 = vmul.f32 %v871, %v885
        %v894 = vmul.f32 %v876, %v886
        %v895 = vld [vmem:[%s3] sm:$0xff]
        %v896 = vld [vmem:[%s3 + $0x8] sm:$0xff]
        %v897 = vld [vmem:[%s3 + $0x10] sm:$0xff]
        %v898 = vld [vmem:[%s3 + $0x18] sm:$0xff]
        %v899 = vld [vmem:[%s3 + $0x20] sm:$0xff]
        %v900 = vld [vmem:[%s3 + $0x28] sm:$0xff]
        %v901 = vld [vmem:[%s3 + $0x30] sm:$0xff]
        %v902 = vld [vmem:[%s3 + $0x38] sm:$0xff]
        %v903 = vmul.f32 %v736, %v887
        %v904 = vmul.f32 %v741, %v888
        %v905 = vmul.f32 %v746, %v889
        %v906 = vmul.f32 %v751, %v890
        %v907 = vmul.f32 %v756, %v891
        %v908 = vmul.f32 %v761, %v892
        %v909 = vmul.f32 %v766, %v893
        %v910 = vmul.f32 %v771, %v894
        %v911 = vsub.f32 %v895, %v903
        %v912 = vsub.f32 %v896, %v904
        %v913 = vsub.f32 %v897, %v905
        %v914 = vsub.f32 %v898, %v906
        %v915 = vsub.f32 %v899, %v907
        %v916 = vsub.f32 %v900, %v908
        %v917 = vsub.f32 %v901, %v909
        %v918 = vsub.f32 %v902, %v910
        %920 = vset.pattern.permute.xlu0 0
        %921 = vperm.xlu0 %920, %v887
        %v922 = vpop.permute.xlu0 %921
        %925 = vset.pattern.permute.xlu0 0
        %926 = vperm.xlu0 %925, %v888
        %v927 = vpop.permute.xlu0 %926
        %930 = vset.pattern.permute.xlu0 0
        %931 = vperm.xlu0 %930, %v889
        %v932 = vpop.permute.xlu0 %931
        %935 = vset.pattern.permute.xlu0 0
        %936 = vperm.xlu0 %935, %v890
        %v937 = vpop.permute.xlu0 %936
        %940 = vset.pattern.permute.xlu0 0
        %941 = vperm.xlu0 %940, %v891
        %v942 = vpop.permute.xlu0 %941
        %945 = vset.pattern.permute.xlu0 0
        %946 = vperm.xlu0 %945, %v892
        %v947 = vpop.permute.xlu0 %946
        %950 = vset.pattern.permute.xlu0 0
        %951 = vperm.xlu0 %950, %v893
        %v952 = vpop.permute.xlu0 %951
        %955 = vset.pattern.permute.xlu0 0
        %956 = vperm.xlu0 %955, %v894
        %v957 = vpop.permute.xlu0 %956
        %v959 = vmul.f32 %v271, %v922
        %v960 = vmul.f32 %v272, %v922
        %v961 = vmul.f32 %v273, %v927
        %v962 = vmul.f32 %v274, %v927
        %v963 = vmul.f32 %v275, %v932
        %v964 = vmul.f32 %v276, %v932
        %v965 = vmul.f32 %v277, %v937
        %v966 = vmul.f32 %v278, %v937
        %v967 = vmul.f32 %v279, %v942
        %v968 = vmul.f32 %v280, %v942
        %v969 = vmul.f32 %v281, %v947
        %v970 = vmul.f32 %v282, %v947
        %v971 = vmul.f32 %v283, %v952
        %v972 = vmul.f32 %v284, %v952
        %v973 = vmul.f32 %v285, %v957
        %v974 = vmul.f32 %v286, %v957
        %976 = vset.pattern.permute.xlu0 0
        %977 = vperm.xlu0 %976, %v911
        %v978 = vpop.permute.xlu0 %977
        %981 = vset.pattern.permute.xlu0 0
        %982 = vperm.xlu0 %981, %v912
        %v983 = vpop.permute.xlu0 %982
        %986 = vset.pattern.permute.xlu0 0
        %987 = vperm.xlu0 %986, %v913
        %v988 = vpop.permute.xlu0 %987
        %991 = vset.pattern.permute.xlu0 0
        %992 = vperm.xlu0 %991, %v914
        %v993 = vpop.permute.xlu0 %992
        %996 = vset.pattern.permute.xlu0 0
        %997 = vperm.xlu0 %996, %v915
        %v998 = vpop.permute.xlu0 %997
        %1001 = vset.pattern.permute.xlu0 0
        %1002 = vperm.xlu0 %1001, %v916
        %v1003 = vpop.permute.xlu0 %1002
        %1006 = vset.pattern.permute.xlu0 0
        %1007 = vperm.xlu0 %1006, %v917
        %v1008 = vpop.permute.xlu0 %1007
        %1011 = vset.pattern.permute.xlu0 0
        %1012 = vperm.xlu0 %1011, %v918
        %v1013 = vpop.permute.xlu0 %1012
        %v1015 = vadd.f32 %v959, %v978
        %v1016 = vadd.f32 %v960, %v978
        %v1017 = vadd.f32 %v961, %v983
        %v1018 = vadd.f32 %v962, %v983
        %v1019 = vadd.f32 %v963, %v988
        %v1020 = vadd.f32 %v964, %v988
        %v1021 = vadd.f32 %v965, %v993
        %v1022 = vadd.f32 %v966, %v993
        %v1023 = vadd.f32 %v967, %v998
        %v1024 = vadd.f32 %v968, %v998
        %v1025 = vadd.f32 %v969, %v1003
        %v1026 = vadd.f32 %v970, %v1003
        %v1027 = vadd.f32 %v971, %v1008
        %v1028 = vadd.f32 %v972, %v1008
        %v1029 = vadd.f32 %v973, %v1013
        %v1030 = vadd.f32 %v974, %v1013
        %v1031 = vsub.f32 0.0, %v1015
        %v1032 = vsub.f32 0.0, %v1016
        %v1033 = vsub.f32 0.0, %v1017
        %v1034 = vsub.f32 0.0, %v1018
        %v1035 = vsub.f32 0.0, %v1019
        %v1036 = vsub.f32 0.0, %v1020
        %v1037 = vsub.f32 0.0, %v1021
        %v1038 = vsub.f32 0.0, %v1022
        %v1039 = vsub.f32 0.0, %v1023
        %v1040 = vsub.f32 0.0, %v1024
        %v1041 = vsub.f32 0.0, %v1025
        %v1042 = vsub.f32 0.0, %v1026
        %v1043 = vsub.f32 0.0, %v1027
        %v1044 = vsub.f32 0.0, %v1028
        %v1045 = vsub.f32 0.0, %v1029
        %v1046 = vsub.f32 0.0, %v1030
        %v1047 = vmul.f32 %v1031, 1.442695
        %v1048 = vpow.pop %v1047
        %v1049 = vmul.f32 %v1032, 1.442695
        %v1050 = vpow.pop %v1049
        %v1051 = vmul.f32 %v1033, 1.442695
        %v1052 = vpow.pop %v1051
        %v1053 = vmul.f32 %v1034, 1.442695
        %v1054 = vpow.pop %v1053
        %v1055 = vmul.f32 %v1035, 1.442695
        %v1056 = vpow.pop %v1055
        %v1057 = vmul.f32 %v1036, 1.442695
        %v1058 = vpow.pop %v1057
        %v1059 = vmul.f32 %v1037, 1.442695
        %v1060 = vpow.pop %v1059
        %v1061 = vmul.f32 %v1038, 1.442695
        %v1062 = vpow.pop %v1061
        %v1063 = vmul.f32 %v1039, 1.442695
        %v1064 = vpow.pop %v1063
        %v1065 = vmul.f32 %v1040, 1.442695
        %v1066 = vpow.pop %v1065
        %v1067 = vmul.f32 %v1041, 1.442695
        %v1068 = vpow.pop %v1067
        %v1069 = vmul.f32 %v1042, 1.442695
        %v1070 = vpow.pop %v1069
        %v1071 = vmul.f32 %v1043, 1.442695
        %v1072 = vpow.pop %v1071
        %v1073 = vmul.f32 %v1044, 1.442695
        %v1074 = vpow.pop %v1073
        %v1075 = vmul.f32 %v1045, 1.442695
        %v1076 = vpow.pop %v1075
        %v1077 = vmul.f32 %v1046, 1.442695
        %v1078 = vpow.pop %v1077
        %v1079 = vadd.f32 %v1048, 1.0
        %v1080 = vadd.f32 %v1050, 1.0
        %v1081 = vadd.f32 %v1052, 1.0
        %v1082 = vadd.f32 %v1054, 1.0
        %v1083 = vadd.f32 %v1056, 1.0
        %v1084 = vadd.f32 %v1058, 1.0
        %v1085 = vadd.f32 %v1060, 1.0
        %v1086 = vadd.f32 %v1062, 1.0
        %v1087 = vadd.f32 %v1064, 1.0
        %v1088 = vadd.f32 %v1066, 1.0
        %v1089 = vadd.f32 %v1068, 1.0
        %v1090 = vadd.f32 %v1070, 1.0
        %v1091 = vadd.f32 %v1072, 1.0
        %v1092 = vadd.f32 %v1074, 1.0
        %v1093 = vadd.f32 %v1076, 1.0
        %v1094 = vadd.f32 %v1078, 1.0
        %v1095 = vrcp.pop %v1079
        %v1096 = vrcp.pop %v1080
        %v1097 = vrcp.pop %v1081
        %v1098 = vrcp.pop %v1082
        %v1099 = vrcp.pop %v1083
        %v1100 = vrcp.pop %v1084
        %v1101 = vrcp.pop %v1085
        %v1102 = vrcp.pop %v1086
        %v1103 = vrcp.pop %v1087
        %v1104 = vrcp.pop %v1088
        %v1105 = vrcp.pop %v1089
        %v1106 = vrcp.pop %v1090
        %v1107 = vrcp.pop %v1091
        %v1108 = vrcp.pop %v1092
        %v1109 = vrcp.pop %v1093
        %v1110 = vrcp.pop %v1094
        %v1111 = vmul.f32 %v1015, %v1095
        %v1112 = vmul.f32 %v1016, %v1096
        %v1113 = vmul.f32 %v1017, %v1097
        %v1114 = vmul.f32 %v1018, %v1098
        %v1115 = vmul.f32 %v1019, %v1099
        %v1116 = vmul.f32 %v1020, %v1100
        %v1117 = vmul.f32 %v1021, %v1101
        %v1118 = vmul.f32 %v1022, %v1102
        %v1119 = vmul.f32 %v1023, %v1103
        %v1120 = vmul.f32 %v1024, %v1104
        %v1121 = vmul.f32 %v1025, %v1105
        %v1122 = vmul.f32 %v1026, %v1106
        %v1123 = vmul.f32 %v1027, %v1107
        %v1124 = vmul.f32 %v1028, %v1108
        %v1125 = vmul.f32 %v1029, %v1109
        %v1126 = vmul.f32 %v1030, %v1110
        %v1127 = vpack.c.bf16 %v1113, %v1111
        %v1128 = vpack.c.bf16 %v1114, %v1112
        %v1129 = vpack.c.bf16 %v1117, %v1115
        %v1130 = vpack.c.bf16 %v1118, %v1116
        %v1131 = vpack.c.bf16 %v1121, %v1119
        %v1132 = vpack.c.bf16 %v1122, %v1120
        %v1133 = vpack.c.bf16 %v1125, %v1123
        %v1134 = vpack.c.bf16 %v1126, %v1124
        %v1135 = vld [vmem:[%s1] sm:$0xf]
        %v1136 = vld [vmem:[%s1 + $0x4] sm:$0xf]
        %v1137 = vld [vmem:[%s1 + $0x8] sm:$0xf]
        %v1138 = vld [vmem:[%s1 + $0xc] sm:$0xf]
        %v1139 = vld [vmem:[%s1 + $0x10] sm:$0xf]
        %v1140 = vld [vmem:[%s1 + $0x14] sm:$0xf]
        %v1141 = vld [vmem:[%s1 + $0x18] sm:$0xf]
        %v1142 = vld [vmem:[%s1 + $0x1c] sm:$0xf]
        %v1143 = vld [vmem:[%s1 + $0x20] sm:$0xf]
        %v1153 = vunpack.c.l.b16 %v1135
        %v1154 = vunpack.c.l.b16 %v1136
        %v1155 = vunpack.c.l.b16 %v1137
        %v1156 = vunpack.c.l.b16 %v1138
        %v1157 = vunpack.c.l.b16 %v1139
        %v1158 = vunpack.c.l.b16 %v1140
        %v1159 = vunpack.c.l.b16 %v1141
        %v1160 = vunpack.c.l.b16 %v1142
        %v1161 = vunpack.c.l.b16 %v1143
        %v1162 = vpack.c.b16 %v1154, %v1153
        %v1163 = vpack.c.b16 %v1156, %v1155
        %v1164 = vpack.c.b16 %v1158, %v1157
        %v1165 = vpack.c.b16 %v1160, %v1159
        %v1166 = vpack.c.b16 %v1161, %v1161
        %v1168 = vsel %vm437, %v1162, 0
        %v1171 = vsel %vm437, %v1163, 0
        %v1174 = vsel %vm437, %v1164, 0
        %v1177 = vsel %vm437, %v1165, 0
        %v1180 = vsel %vm437, %v1166, 0
        %1182 = vmatprep.subr.bf16.mxu0 %v1128
        %1183 = vmatpush1.bf16.msra.mxu0 %v1127
        %1184 = vmatprep.subr.bf16.mxu0 %v1130
        %1185 = vmatpush1.bf16.msra.mxu0 %v1129
        %1186 = vmatprep.subr.bf16.mxu0 %v1132
        %1187 = vmatpush1.bf16.msra.mxu0 %v1131
        %1188 = vmatprep.subr.bf16.mxu0 %v1134
        %1189 = vmatpush1.bf16.msra.mxu0 %v1133
        %1190 = vmatprep.subr.bf16.mxu0 0
        %1191 = vmatpush1.bf16.msra.mxu0 0
        %1192 = vmatprep.subr.bf16.mxu0 0
        %1193 = vmatpush1.bf16.msra.mxu0 0
        %1194 = vmatprep.subr.bf16.mxu0 0
        %1195 = vmatpush1.bf16.msra.mxu0 0
        %1196 = vmatprep.subr.bf16.mxu0 0
        %1197 = vmatpush1.bf16.msra.mxu0 0
        %1198 = vmatprep.subr.bf16.mxu0 0
        %1199 = vmatpush1.bf16.msra.mxu0 0
        %1200 = vmatprep.subr.bf16.mxu0 0
        %1201 = vmatpush1.bf16.msra.mxu0 0
        %1202 = vmatprep.subr.bf16.mxu0 0
        %1203 = vmatpush1.bf16.msra.mxu0 0
        %1204 = vmatprep.subr.bf16.mxu0 0
        %1205 = vmatpush1.bf16.msra.mxu0 0
        %1206 = vmatprep.subr.bf16.mxu0 0
        %1207 = vmatpush1.bf16.msra.mxu0 0
        %1208 = vmatprep.subr.bf16.mxu0 0
        %1209 = vmatpush1.bf16.msra.mxu0 0
        %1210 = vmatprep.subr.bf16.mxu0 0
        %1211 = vmatpush1.bf16.msra.mxu0 0
        %1212 = vmatprep.subr.bf16.mxu0 0
        %1213 = vmatpush1.bf16.msra.mxu0 0
        %1214 = vmatprep.mubr.bf16.mxu0 0
        %1215 = vmatmul.mubr.bf16.gmra.mrb[0].mxu0 %v1168
        %v1216 = vpop.f32.mrb[0].mxu0
        %v1217 = vadd.f32 0.0, %v1216
        %v1218 = vpop.f32.mrb[0].mxu0
        %v1219 = vadd.f32 0.0, %v1218
        %v1220 = vpop.f32.mrb[0].mxu0
        %v1221 = vadd.f32 0.0, %v1220
        %v1222 = vpop.f32.mrb[0].mxu0
        %v1223 = vadd.f32 0.0, %v1222
        %1224 = vmatprep.mubr.bf16.mxu0 0
        %1225 = vmatmul.mubr.bf16.gmra.mrb[0].mxu0 %v1171
        %v1226 = vpop.f32.mrb[0].mxu0
        %v1227 = vadd.f32 0.0, %v1226
        %v1228 = vpop.f32.mrb[0].mxu0
        %v1229 = vadd.f32 0.0, %v1228
        %v1230 = vpop.f32.mrb[0].mxu0
        %v1231 = vadd.f32 0.0, %v1230
        %v1232 = vpop.f32.mrb[0].mxu0
        %v1233 = vadd.f32 0.0, %v1232
        %1234 = vmatprep.mubr.bf16.mxu0 0
        %1235 = vmatmul.mubr.bf16.gmra.mrb[0].mxu0 %v1174
        %v1236 = vpop.f32.mrb[0].mxu0
        %v1237 = vadd.f32 0.0, %v1236
        %v1238 = vpop.f32.mrb[0].mxu0
        %v1239 = vadd.f32 0.0, %v1238
        %v1240 = vpop.f32.mrb[0].mxu0
        %v1241 = vadd.f32 0.0, %v1240
        %v1242 = vpop.f32.mrb[0].mxu0
        %v1243 = vadd.f32 0.0, %v1242
        %1244 = vmatprep.mubr.bf16.mxu0 0
        %1245 = vmatmul.mubr.bf16.gmra.mrb[0].mxu0 %v1177
        %v1246 = vpop.f32.mrb[0].mxu0
        %v1247 = vadd.f32 0.0, %v1246
        %v1248 = vpop.f32.mrb[0].mxu0
        %v1249 = vadd.f32 0.0, %v1248
        %v1250 = vpop.f32.mrb[0].mxu0
        %v1251 = vadd.f32 0.0, %v1250
        %v1252 = vpop.f32.mrb[0].mxu0
        %v1253 = vadd.f32 0.0, %v1252
        %1254 = vmatprep.mubr.bf16.mxu0 0
        %1255 = vmatmul.mubr.bf16.gmra.mrb[0].mxu0 %v1180
        %v1256 = vpop.f32.mrb[0].mxu0
        %v1257 = vadd.f32 0.0, %v1256
        %v1258 = vpop.f32.mrb[0].mxu0
        %v1259 = vadd.f32 0.0, %v1258
        %v1260 = vpop.f32.mrb[0].mxu0
        %v1261 = vpop.f32.mrb[0].mxu0
        %1262 = vdwg.mxu0
        %v1263 = vadd.s32 %v352, 128
        %v1264 = vld [vmem:[%s5] sm:$0x3]
        %1265 = vrot.lane.b32.xlu0 %v1217, 17
        %v1266 = vpop.permute.xlu0 %1265
        %1267 = vrot.lane.b32.xlu0 %v1219, 17
        %v1268 = vpop.permute.xlu0 %1267
        %vm1269 = vcmp.lt.s32.totalorder %v352, 17
        %v1270 = vsel %vm1269, %v1266, %v1268
        %v1271 = vsel %vm1269, %v1268, %v1266
        %vm1272 = vcmp.ge.s32.totalorder %v352, 16
        %vm1273 = vcmp.ge.s32.totalorder %v1263, 16
        %vm1274 = vcmp.ge.s32.totalorder %v1264, 1
        %v1275 = vsel %vm1274, 1, 0
        %v1276 = vlaneseq
        %v1277 = vshrl.u32 %v1276, 7
        %v1278 = vsub.s32 0, %v1277
        %v1279 = vrot.slane %v1275, %v1278
        %v1280 = vlaneseq
        %v1281 = vshrl.u32 %v1280, 7
        %v1282 = vsub.s32 1, %v1281
        %v1283 = vrot.slane %v1275, %v1282
        %vm1284 = vcmp.ne.s32.totalorder %v1279, 0
        %vm1285 = vcmp.ne.s32.totalorder %v1283, 0
        %vm1286 = vmand %vm1272, %vm1284
        %vm1287 = vmand %vm1273, %vm1285
        %v1288 = vsel %vm1286, 1, 0
        %v1289 = vsel %vm1287, 1, 0
        %v1290 = vcvt.s32.f32 %v1288
        %v1291 = vcvt.s32.f32 %v1289
        %v1292 = vlaneseq
        %v1293 = vshrl.u32 %v1292, 7
        %v1294 = vsub.s32 0, %v1293
        %v1295 = vrot.slane %v1290, %v1294
        %v1296 = vlaneseq
        %v1297 = vshrl.u32 %v1296, 7
        %v1298 = vsub.s32 0, %v1297
        %v1299 = vrot.slane %v1291, %v1298
        %v1300 = vmul.f32 %v1271, %v1295
        %v1301 = vmul.f32 %v1270, %v1299
        %v1302 = vadd.f32 %v1300, 0.0
        %v1303 = vadd.f32 %v1301, 0.0
        %1304 = vrot.lane.b32.xlu0 %v1221, 16
        %v1305 = vpop.permute.xlu0 %1304
        %1306 = vrot.lane.b32.xlu0 %v1223, 16
        %v1307 = vpop.permute.xlu0 %1306
        %vm1308 = vcmp.lt.s32.totalorder %v352, 16
        %v1309 = vsel %vm1308, %v1305, %v1307
        %v1310 = vsel %vm1308, %v1307, %v1305
        %v1311 = vsel %vm1272, 1, 0
        %v1312 = vsel %vm1273, 1, 0
        %v1313 = vcvt.s32.f32 %v1311
        %v1314 = vcvt.s32.f32 %v1312
        %v1315 = vmul.f32 %v1310, %v1313
        %v1316 = vmul.f32 %v1309, %v1314
        %v1317 = vadd.f32 %v1302, %v1315
        %v1318 = vadd.f32 %v1303, %v1316
        %1319 = vrot.lane.b32.xlu0 %v1227, 15
        %v1320 = vpop.permute.xlu0 %1319
        %1321 = vrot.lane.b32.xlu0 %v1229, 15
        %v1322 = vpop.permute.xlu0 %1321
        %vm1323 = vcmp.lt.s32.totalorder %v352, 15
        %v1324 = vsel %vm1323, %v1320, %v1322
        %v1325 = vsel %vm1323, %v1322, %v1320
        %vm1326 = vcmp.le.s32.totalorder %v1264, 14
        %v1327 = vsel %vm1326, 1, 0
        %v1328 = vlaneseq
        %v1329 = vshrl.u32 %v1328, 7
        %v1330 = vsub.s32 0, %v1329
        %v1331 = vrot.slane %v1327, %v1330
        %v1332 = vlaneseq
        %v1333 = vshrl.u32 %v1332, 7
        %v1334 = vsub.s32 1, %v1333
        %v1335 = vrot.slane %v1327, %v1334
        %vm1336 = vcmp.ne.s32.totalorder %v1331, 0
        %vm1337 = vcmp.ne.s32.totalorder %v1335, 0
        %vm1338 = vmand %vm1272, %vm1336
        %vm1339 = vmand %vm1273, %vm1337
        %v1340 = vsel %vm1338, 1, 0
        %v1341 = vsel %vm1339, 1, 0
        %v1342 = vcvt.s32.f32 %v1340
        %v1343 = vcvt.s32.f32 %v1341
        %v1344 = vlaneseq
        %v1345 = vshrl.u32 %v1344, 7
        %v1346 = vsub.s32 0, %v1345
        %v1347 = vrot.slane %v1342, %v1346
        %v1348 = vlaneseq
        %v1349 = vshrl.u32 %v1348, 7
        %v1350 = vsub.s32 0, %v1349
        %v1351 = vrot.slane %v1343, %v1350
        %v1352 = vmul.f32 %v1325, %v1347
        %v1353 = vmul.f32 %v1324, %v1351
        %v1354 = vadd.f32 %v1317, %v1352
        %v1355 = vadd.f32 %v1318, %v1353
        %1356 = vrot.lane.b32.xlu0 %v1231, 1
        %v1357 = vpop.permute.xlu0 %1356
        %1358 = vrot.lane.b32.xlu0 %v1233, 1
        %v1359 = vpop.permute.xlu0 %1358
        %vm1360 = vcmp.lt.s32.totalorder %v352, 1
        %v1361 = vsel %vm1360, %v1357, %v1359
        %v1362 = vsel %vm1360, %v1359, %v1357
        %v1363 = vcvt.s32.f32 %v1275
        %v1365 = vlaneseq
        %v1366 = vshrl.u32 %v1365, 7
        %v1367 = vsub.s32 0, %v1366
        %v1368 = vrot.slane %v1363, %v1367
        %v1369 = vlaneseq
        %v1370 = vshrl.u32 %v1369, 7
        %v1371 = vsub.s32 1, %v1370
        %v1372 = vrot.slane %v1363, %v1371
        %v1375 = vmul.f32 %v1362, %v1368
        %v1376 = vmul.f32 %v1361, %v1372
        %v1377 = vadd.f32 %v1354, %v1375
        %v1378 = vadd.f32 %v1355, %v1376
        %v1379 = vadd.f32 %v1377, %v1237
        %v1380 = vadd.f32 %v1378, %v1239
        %1381 = vrot.lane.b32.xlu0 %v1241, 127
        %v1382 = vpop.permute.xlu0 %1381
        %1383 = vrot.lane.b32.xlu0 %v1243, 127
        %v1384 = vpop.permute.xlu0 %1383
        %vm1385 = vcmp.lt.s32.totalorder %v352, 127
        %v1386 = vsel %vm1385, %v1382, %v1384
        %v1387 = vsel %vm1385, %v1384, %v1382
        %v1388 = vcvt.s32.f32 %v1327
        %v1390 = vlaneseq
        %v1391 = vshrl.u32 %v1390, 7
        %v1392 = vsub.s32 0, %v1391
        %v1393 = vrot.slane %v1388, %v1392
        %v1394 = vlaneseq
        %v1395 = vshrl.u32 %v1394, 7
        %v1396 = vsub.s32 1, %v1395
        %v1397 = vrot.slane %v1388, %v1396
        %v1400 = vmul.f32 %v1386, %v1393
        %v1401 = vmul.f32 %v1387, %v1397
        %v1402 = vadd.f32 %v1379, %v1400
        %v1403 = vadd.f32 %v1380, %v1401
        %1404 = vrot.lane.b32.xlu0 %v1247, 113
        %v1405 = vpop.permute.xlu0 %1404
        %1406 = vrot.lane.b32.xlu0 %v1249, 113
        %v1407 = vpop.permute.xlu0 %1406
        %vm1408 = vcmp.lt.s32.totalorder %v352, 113
        %v1409 = vsel %vm1408, %v1405, %v1407
        %v1410 = vsel %vm1408, %v1407, %v1405
        %vm1411 = vcmp.lt.s32.totalorder %v352, 240
        %vm1412 = vcmp.lt.s32.totalorder %v1263, 240
        %vm1413 = vmand %vm1411, %vm1284
        %vm1414 = vmand %vm1412, %vm1285
        %v1415 = vsel %vm1413, 1, 0
        %v1416 = vsel %vm1414, 1, 0
        %v1417 = vcvt.s32.f32 %v1415
        %v1418 = vcvt.s32.f32 %v1416
        %v1419 = vlaneseq
        %v1420 = vshrl.u32 %v1419, 7
        %v1421 = vsub.s32 0, %v1420
        %v1422 = vrot.slane %v1417, %v1421
        %v1423 = vlaneseq
        %v1424 = vshrl.u32 %v1423, 7
        %v1425 = vsub.s32 0, %v1424
        %v1426 = vrot.slane %v1418, %v1425
        %v1427 = vmul.f32 %v1409, %v1422
        %v1428 = vmul.f32 %v1410, %v1426
        %v1429 = vadd.f32 %v1402, %v1427
        %v1430 = vadd.f32 %v1403, %v1428
        %1431 = vrot.lane.b32.xlu0 %v1251, 112
        %v1432 = vpop.permute.xlu0 %1431
        %1433 = vrot.lane.b32.xlu0 %v1253, 112
        %v1434 = vpop.permute.xlu0 %1433
        %vm1435 = vcmp.lt.s32.totalorder %v352, 112
        %v1436 = vsel %vm1435, %v1432, %v1434
        %v1437 = vsel %vm1435, %v1434, %v1432
        %v1438 = vsel %vm1411, 1, 0
        %v1439 = vsel %vm1412, 1, 0
        %v1440 = vcvt.s32.f32 %v1438
        %v1441 = vcvt.s32.f32 %v1439
        %v1442 = vmul.f32 %v1436, %v1440
        %v1443 = vmul.f32 %v1437, %v1441
        %v1444 = vadd.f32 %v1429, %v1442
        %v1445 = vadd.f32 %v1430, %v1443
        %1446 = vrot.lane.b32.xlu0 %v1257, 111
        %v1447 = vpop.permute.xlu0 %1446
        %1448 = vrot.lane.b32.xlu0 %v1259, 111
        %v1449 = vpop.permute.xlu0 %1448
        %vm1450 = vcmp.lt.s32.totalorder %v352, 111
        %v1451 = vsel %vm1450, %v1447, %v1449
        %v1452 = vsel %vm1450, %v1449, %v1447
        %vm1453 = vmand %vm1411, %vm1336
        %vm1454 = vmand %vm1412, %vm1337
        %v1455 = vsel %vm1453, 1, 0
        %v1456 = vsel %vm1454, 1, 0
        %v1457 = vcvt.s32.f32 %v1455
        %v1458 = vcvt.s32.f32 %v1456
        %v1459 = vlaneseq
        %v1460 = vshrl.u32 %v1459, 7
        %v1461 = vsub.s32 0, %v1460
        %v1462 = vrot.slane %v1457, %v1461
        %v1463 = vlaneseq
        %v1464 = vshrl.u32 %v1463, 7
        %v1465 = vsub.s32 0, %v1464
        %v1466 = vrot.slane %v1458, %v1465
        %v1467 = vmul.f32 %v1451, %v1462
        %v1468 = vmul.f32 %v1452, %v1466
        %v1469 = vadd.f32 %v1444, %v1467
        %v1470 = vadd.f32 %v1445, %v1468
        %v1471 = vld [vmem:[%s4] sm:$0xf]
        %1473 = vset.pattern.permute.xlu0 0
        %1474 = vperm.xlu0 %1473, %v1471
        %v1475 = vpop.permute.xlu0 %1474
        %v1477 = vadd.f32 %v1469, %v1475
        %v1478 = vadd.f32 %v1470, %v1475
        %v1481 = vcombine.low %v1477, %v1478
        %1483 = vst [vmem:[%s269] sm:$0xff] %v1481
        %s1484 = sand.u32 %s162, 1
        %s1485 = scalar_lea.sflag [#allocation4], %s1484
        %s1486 = sand.u32 %s162, 1
        %s1487 = smul.addr %s1486, 8
        %s1488 = scalar_lea.vmem [#allocation5], %s1487
        // Predicated region
        $region49: #{tpu_custom_call.1} parent=43 // pred_check
          %p1489 = pneg %p172
        $region50: #{tpu_custom_call.1} parent=43 // pred_check_branch
          %1491 = sbr.rel (%p1489) target = $region52
        $region51: #{tpu_custom_call.1} parent=43 // pred_region
          %s1493 = ssub.s32 128, 128
          %1494 = vsyncadd %s1485, %s1493
          %s1495 = smul.addr %s23, 2
          %s1496 = smul.addr %s1495, 64
          %s1497 = scalar_lea.hbm %s6, %s1496
          %s1499 = sshll.u32 %s1488, 4
          %s1500 = int_to_ptr.vmem [resolvable:$true] %s1499
          %1502 = dma.vmem_to_hbm [thread:$0]  %s1500, 128, %s1497, %s1485
        $region52: #{tpu_custom_call.1} parent=43 // pred_fallthru
          _
      $region44: #{tpu_custom_call.1} parent=5 // pred_fallthru
        _
      %p1503 = scmp.le.s32.totalorder 2, %s18
      // Predicated region
      $region53: #{tpu_custom_call.1} parent=5 // pred_check
        %p1504 = pneg %p1503
      $region54: #{tpu_custom_call.1} parent=5 // pred_check_branch
        %1506 = sbr.rel (%p1504) target = $region56
      $region55: #{tpu_custom_call.1} parent=5 // pred_region
        %s1507 = ssub.s32 %s18, 2
        // Predicated region
        $region57: #{tpu_custom_call.1} parent=55 // pred_check
          %p1508 = pneg %p178
        $region58: #{tpu_custom_call.1} parent=55 // pred_check_branch
          %1510 = sbr.rel (%p1508) target = $region60
        $region59: #{tpu_custom_call.1} parent=55 // pred_region
          %s1511 = sand.u32 %s163, 1
          %s1512 = scalar_lea.sflag [#allocation4], %s1511
          %s1513 = sand.u32 %s163, 1
          %s1514 = smul.addr %s1513, 8
          %s1515 = scalar_lea.vmem [#allocation5], %s1514
          %1516 = dma.done %s1512, 128
        $region60: #{tpu_custom_call.1} parent=55 // pred_fallthru
          _
      $region56: #{tpu_custom_call.1} parent=5 // pred_fallthru
        _
    $region6: #{tpu_custom_call.1} parent=1 // loop_footer
      %s22 = sadd.s32 1, %s18
    $region7: #{tpu_custom_call.1} parent=1 // loop_footer_branch
      %17 = sbr.rel target = $region3
    $region8: #{tpu_custom_call.1} parent=1 // loop_exit
      _
    %1517 = vsyncpa [#allocation3], 1
    %s1518 = scalar_lea.sflag [#allocation3], 1
    %1519 = vsyncpa %s1518, 1
    %1520 = vsyncpa [#allocation4], 1
    %s1521 = scalar_lea.sflag [#allocation4], 1
    %1522 = vsyncpa %s1521, 1

</llo_original>
